<compile_context>
chip_gen: v7x
topology: tpu7x:2x2x1
jax: 0.10.0
libtpu: 0.0.40
codegen_flags: <defaults>
</compile_context>

<pallas_src>
import functools

import jax
import jax.numpy as jnp
from jax.experimental import pallas as pl
from jax.experimental.pallas import tpu as pltpu

HIDDEN_SIZE = 512


def actor_kernel(x_ref,
                 w1_ref, b1_ref,
                 w2_ref, b2_ref,
                 w3_ref, b3_ref,
                 wh_ref, bh_ref,
                 mean_ref, std_ref, *, action_size):
    x = x_ref[...]

    def linear(h, w_ref, b_ref):
        # bf16 operands on the MXU, f32 accumulation; bias add stays f32 (VPU).
        return jnp.dot(h.astype(w_ref.dtype), w_ref[...],
                       preferred_element_type=jnp.float32) + b_ref[...]

    # Backbone: Linear -> ReLU, three times.
    h = jnp.maximum(linear(x, w1_ref, b1_ref), 0.0)
    h = jnp.maximum(linear(h, w2_ref, b2_ref), 0.0)
    h = jnp.maximum(linear(h, w3_ref, b3_ref), 0.0)

    # Fused heads: columns [:A] = mean, columns [A:] = log_std.
    head = linear(h, wh_ref, bh_ref)                        # (TB, 2A) f32
    mean_ref[...] = head[:, :action_size].astype(mean_ref.dtype)
    log_std = jnp.clip(head[:, action_size:], -20.0, 2.0)   # VPU clip
    std_ref[...] = jnp.exp(log_std).astype(std_ref.dtype)   # EUP exp


def _round_up(x, m):
    return ((x + m - 1) // m) * m


def _choose_batch_tile(batch, tile_b, align):
    """Pick the batch tile: large (amortize per-step overhead), aligned, with
    >=2 grid steps for large batches (v7x megacore), and -- when possible -- a
    tile that divides the batch exactly so no padding pass is required."""
    if batch <= tile_b:
        return batch                        # single full-batch block, no padding
    cap = max(align, (tile_b // align) * align)
    # Keep >= 2 reasonably balanced grid steps so v7x can use both TensorCores.
    cap = min(cap, _round_up(pl.cdiv(batch, 2), align))
    cap = max(cap, align)
    for tb in range(cap, align - 1, -align):
        if batch % tb == 0:
            return tb
    return cap                              # rare fallback: wrapper pads remainder


def actor_forward(state, params, *, tile_b=1024, batch_align=256,
                  out_dtype=jnp.float32):
    """state: (B, S) float32 -> (mean (B, A), std (B, A)).

    batch_align: 256 is a good choice for v6e/v7x; 128 also fine for v5e.
    """
    B, S = state.shape
    A = params["bh"].shape[1] // 2
    H = params["w2"].shape[0]

    tb = _choose_batch_tile(B, tile_b, batch_align)
    b_pad = _round_up(B, tb)
    if b_pad != B:
        # Rare fallback (no aligned tile divides B).  Typical training batches
        # (powers of two) and any B <= tile_b never hit this extra pad pass.
        state = jnp.pad(state, ((0, b_pad - B), (0, 0)))
    grid = (b_pad // tb,)

    weight_args = (params["w1"], params["b1"],
                   params["w2"], params["b2"],
                   params["w3"], params["b3"],
                   params["wh"], params["bh"])

    def resident(arr):
        # Full-array block + constant index_map: DMA'd once, stays VMEM-resident.
        return pl.BlockSpec(arr.shape, lambda i: (0, 0))

    weight_bytes = sum(int(a.size) * a.dtype.itemsize for a in weight_args)
    out_itemsize = jnp.dtype(out_dtype).itemsize
    cost = pl.CostEstimate(
        flops=2 * b_pad * (S * H + 2 * H * H + H * 2 * A),
        transcendentals=b_pad * A,
        bytes_accessed=(b_pad * S * state.dtype.itemsize
                        + weight_bytes
                        + 2 * b_pad * A * out_itemsize),
    )

    mean, std = pl.pallas_call(
        functools.partial(actor_kernel, action_size=A),
        grid=grid,
        in_specs=[pl.BlockSpec((tb, S), lambda i: (i, 0))]
                 + [resident(a) for a in weight_args],
        out_specs=(pl.BlockSpec((tb, A), lambda i: (i, 0)),
                   pl.BlockSpec((tb, A), lambda i: (i, 0))),
        out_shape=(jax.ShapeDtypeStruct((b_pad, A), out_dtype),
                   jax.ShapeDtypeStruct((b_pad, A), out_dtype)),
        cost_estimate=cost,
        compiler_params=pltpu.CompilerParams(
            dimension_semantics=("parallel",)),
    )(state, *weight_args)

    if b_pad != B:
        mean, std = mean[:B], std[:B]
    return mean, std


def init_actor_params(key, state_size, action_size, weight_dtype=jnp.bfloat16):
    """Mimics PyTorch nn.Linear default init; weights stored in bf16, biases f32."""
    def linear(key, fan_in, fan_out):
        kw, kb = jax.random.split(key)
        bound = 1.0 / jnp.sqrt(fan_in)
        w = jax.random.uniform(kw, (fan_in, fan_out), jnp.float32, -bound, bound)
        b = jax.random.uniform(kb, (1, fan_out), jnp.float32, -bound, bound)
        return w.astype(weight_dtype), b

    k1, k2, k3, km, ks = jax.random.split(key, 5)
    w1, b1 = linear(k1, state_size, HIDDEN_SIZE)
    w2, b2 = linear(k2, HIDDEN_SIZE, HIDDEN_SIZE)
    w3, b3 = linear(k3, HIDDEN_SIZE, HIDDEN_SIZE)
    wm, bm = linear(km, HIDDEN_SIZE, action_size)
    ws, bs = linear(ks, HIDDEN_SIZE, action_size)
    # Fuse the two heads: cols [:A] -> mean, cols [A:] -> log_std.
    wh = jnp.concatenate([wm, ws], axis=1)
    bh = jnp.concatenate([bm, bs], axis=1)
    return dict(w1=w1, b1=b1, w2=w2, b2=b2, w3=w3, b3=b3, wh=wh, bh=bh)


def actor_forward_ref(state, params):
    """Pure-JAX reference (same bf16-weight quantization) for correctness."""
    A = params["bh"].shape[1] // 2

    def linear(h, w, b):
        return jnp.dot(h.astype(w.dtype), w,
                       preferred_element_type=jnp.float32) + b

    h = jnp.maximum(linear(state, params["w1"], params["b1"]), 0.0)
    h = jnp.maximum(linear(h, params["w2"], params["b2"]), 0.0)
    h = jnp.maximum(linear(h, params["w3"], params["b3"]), 0.0)
    head = linear(h, params["wh"], params["bh"])
    mean = head[:, :A]
    log_std = jnp.clip(head[:, A:], -20.0, 2.0)
    return mean, jnp.exp(log_std)


if __name__ == "__main__":
    key = jax.random.PRNGKey(0)
    kp, kx1, kx2, kx3 = jax.random.split(key, 4)

    state_size = 8
    action_size = 4
    params = init_actor_params(kp, state_size, action_size)

    # --- small batch: single full-batch block, no padding (B=4 <= tile_b) ---
    state = jax.random.normal(kx1, (4, state_size), jnp.float32)
    mean, std = actor_forward(state, params)
    jax.block_until_ready((mean, std))
    mean_ref, std_ref = actor_forward_ref(state, params)
    assert mean.shape == (4, action_size) and std.shape == (4, action_size)
    assert jnp.allclose(mean, mean_ref, atol=1e-3, rtol=1e-3)
    assert jnp.allclose(std, std_ref, atol=1e-3, rtol=1e-3)
    assert bool(jnp.all(std > 0.0))

    # --- multi-tile grid, tile divides B exactly (B=96, tb=32 -> grid=(3,)).
    #     Tiny tiles are test-only; production uses tb >= 256. ---
    state2 = jax.random.normal(kx2, (96, state_size), jnp.float32)
    mean2, std2 = actor_forward(state2, params, tile_b=32, batch_align=8)
    jax.block_until_ready((mean2, std2))
    mean2_ref, std2_ref = actor_forward_ref(state2, params)
    assert mean2.shape == (96, action_size) and std2.shape == (96, action_size)
    assert jnp.allclose(mean2, mean2_ref, atol=1e-3, rtol=1e-3)
    assert jnp.allclose(std2, std2_ref, atol=1e-3, rtol=1e-3)

    # --- ragged-batch fallback (B=50, tb=16 -> pad to 64, grid=(4,)) ---
    state3 = jax.random.normal(kx3, (50, state_size), jnp.float32)
    mean3, std3 = actor_forward(state3, params, tile_b=16, batch_align=8)
    jax.block_until_ready((mean3, std3))
    mean3_ref, std3_ref = actor_forward_ref(state3, params)
    assert mean3.shape == (50, action_size) and std3.shape == (50, action_size)
    assert jnp.allclose(mean3, mean3_ref, atol=1e-3, rtol=1e-3)
    assert jnp.allclose(std3, std3_ref, atol=1e-3, rtol=1e-3)
    assert bool(jnp.all(std3 > 0.0))

    # TODO(synk): `Actor.sample` (Normal.rsample + tanh-squash log_prob) is
    # stochastic host-side policy logic and is left outside the kernel.
    print("KERNEL_OK")
</pallas_src>

<mosaic_0001>
module attributes {stable_mosaic.version = 11 : i64} {
  func.func @actor_kernel(%arg0: i32, %arg1: memref<4x8xf32, #tpu.memory_space<vmem>>, %arg2: memref<8x512xbf16, #tpu.memory_space<vmem>>, %arg3: memref<1x512xf32, #tpu.memory_space<vmem>>, %arg4: memref<512x512xbf16, #tpu.memory_space<vmem>>, %arg5: memref<1x512xf32, #tpu.memory_space<vmem>>, %arg6: memref<512x512xbf16, #tpu.memory_space<vmem>>, %arg7: memref<1x512xf32, #tpu.memory_space<vmem>>, %arg8: memref<512x8xbf16, #tpu.memory_space<vmem>>, %arg9: memref<1x8xf32, #tpu.memory_space<vmem>>, %arg10: memref<4x4xf32, #tpu.memory_space<vmem>>, %arg11: memref<4x4xf32, #tpu.memory_space<vmem>>) attributes {dimension_semantics = [#tpu.dimension_semantics<parallel>], iteration_bounds = array<i64: 1>, scalar_prefetch = 0 : i64, scratch_operands = 0 : i64, tpu.core_type = #tpu.core_type<tc>, window_params = [{transform_indices = @transform_0, window_bounds = array<i64: 4, 8>}, {pipeline_mode = #tpu.pipeline_mode<synchronous>, transform_indices = @transform_1, window_bounds = array<i64: 8, 512>}, {pipeline_mode = #tpu.pipeline_mode<synchronous>, transform_indices = @transform_2, window_bounds = array<i64: 1, 512>}, {pipeline_mode = #tpu.pipeline_mode<synchronous>, transform_indices = @transform_3, window_bounds = array<i64: 512, 512>}, {pipeline_mode = #tpu.pipeline_mode<synchronous>, transform_indices = @transform_4, window_bounds = array<i64: 1, 512>}, {pipeline_mode = #tpu.pipeline_mode<synchronous>, transform_indices = @transform_5, window_bounds = array<i64: 512, 512>}, {pipeline_mode = #tpu.pipeline_mode<synchronous>, transform_indices = @transform_6, window_bounds = array<i64: 1, 512>}, {pipeline_mode = #tpu.pipeline_mode<synchronous>, transform_indices = @transform_7, window_bounds = array<i64: 512, 8>}, {pipeline_mode = #tpu.pipeline_mode<synchronous>, transform_indices = @transform_8, window_bounds = array<i64: 1, 8>}, {transform_indices = @transform_9, window_bounds = array<i64: 4, 4>}, {transform_indices = @transform_10, window_bounds = array<i64: 4, 4>}]} {
    %c0 = arith.constant 0 : index
    %c0_0 = arith.constant 0 : index
    %0 = vector.load %arg1[%c0, %c0_0] : memref<4x8xf32, #tpu.memory_space<vmem>>, vector<4x8xf32>
    %1 = arith.truncf %0 : vector<4x8xf32> to vector<4x8xbf16>
    %c0_1 = arith.constant 0 : index
    %c0_2 = arith.constant 0 : index
    %2 = vector.load %arg2[%c0_1, %c0_2] : memref<8x512xbf16, #tpu.memory_space<vmem>>, vector<8x512xbf16>
    %cst = arith.constant dense<0.000000e+00> : vector<4x512xf32>
    %3 = tpu.matmul %1, %2, %cst {dimension_numbers = #tpu.dot_dimension_numbers<[1], [0], [0], [1], [0, 0, 1, 1], [], []>} : vector<4x8xbf16>, vector<8x512xbf16>, vector<4x512xf32> -> vector<4x512xf32>
    %c0_3 = arith.constant 0 : index
    %c0_4 = arith.constant 0 : index
    %4 = vector.load %arg3[%c0_3, %c0_4] : memref<1x512xf32, #tpu.memory_space<vmem>>, vector<1x512xf32>
    %5 = vector.broadcast %4 : vector<1x512xf32> to vector<4x512xf32>
    %6 = arith.addf %3, %5 : vector<4x512xf32>
    %cst_5 = arith.constant 0.000000e+00 : f32
    %7 = vector.broadcast %cst_5 : f32 to vector<4x512xf32>
    %8 = arith.maximumf %6, %7 : vector<4x512xf32>
    %9 = arith.truncf %8 : vector<4x512xf32> to vector<4x512xbf16>
    %c0_6 = arith.constant 0 : index
    %c0_7 = arith.constant 0 : index
    %10 = vector.load %arg4[%c0_6, %c0_7] : memref<512x512xbf16, #tpu.memory_space<vmem>>, vector<512x512xbf16>
    %cst_8 = arith.constant dense<0.000000e+00> : vector<4x512xf32>
    %11 = tpu.matmul %9, %10, %cst_8 {dimension_numbers = #tpu.dot_dimension_numbers<[1], [0], [0], [1], [0, 0, 1, 1], [], []>} : vector<4x512xbf16>, vector<512x512xbf16>, vector<4x512xf32> -> vector<4x512xf32>
    %c0_9 = arith.constant 0 : index
    %c0_10 = arith.constant 0 : index
    %12 = vector.load %arg5[%c0_9, %c0_10] : memref<1x512xf32, #tpu.memory_space<vmem>>, vector<1x512xf32>
    %13 = vector.broadcast %12 : vector<1x512xf32> to vector<4x512xf32>
    %14 = arith.addf %11, %13 : vector<4x512xf32>
    %cst_11 = arith.constant 0.000000e+00 : f32
    %15 = vector.broadcast %cst_11 : f32 to vector<4x512xf32>
    %16 = arith.maximumf %14, %15 : vector<4x512xf32>
    %17 = arith.truncf %16 : vector<4x512xf32> to vector<4x512xbf16>
    %c0_12 = arith.constant 0 : index
    %c0_13 = arith.constant 0 : index
    %18 = vector.load %arg6[%c0_12, %c0_13] : memref<512x512xbf16, #tpu.memory_space<vmem>>, vector<512x512xbf16>
    %cst_14 = arith.constant dense<0.000000e+00> : vector<4x512xf32>
    %19 = tpu.matmul %17, %18, %cst_14 {dimension_numbers = #tpu.dot_dimension_numbers<[1], [0], [0], [1], [0, 0, 1, 1], [], []>} : vector<4x512xbf16>, vector<512x512xbf16>, vector<4x512xf32> -> vector<4x512xf32>
    %c0_15 = arith.constant 0 : index
    %c0_16 = arith.constant 0 : index
    %20 = vector.load %arg7[%c0_15, %c0_16] : memref<1x512xf32, #tpu.memory_space<vmem>>, vector<1x512xf32>
    %21 = vector.broadcast %20 : vector<1x512xf32> to vector<4x512xf32>
    %22 = arith.addf %19, %21 : vector<4x512xf32>
    %cst_17 = arith.constant 0.000000e+00 : f32
    %23 = vector.broadcast %cst_17 : f32 to vector<4x512xf32>
    %24 = arith.maximumf %22, %23 : vector<4x512xf32>
    %25 = arith.truncf %24 : vector<4x512xf32> to vector<4x512xbf16>
    %c0_18 = arith.constant 0 : index
    %c0_19 = arith.constant 0 : index
    %26 = vector.load %arg8[%c0_18, %c0_19] : memref<512x8xbf16, #tpu.memory_space<vmem>>, vector<512x8xbf16>
    %cst_20 = arith.constant dense<0.000000e+00> : vector<4x8xf32>
    %27 = tpu.matmul %25, %26, %cst_20 {dimension_numbers = #tpu.dot_dimension_numbers<[1], [0], [0], [1], [0, 0, 1, 1], [], []>} : vector<4x512xbf16>, vector<512x8xbf16>, vector<4x8xf32> -> vector<4x8xf32>
    %c0_21 = arith.constant 0 : index
    %c0_22 = arith.constant 0 : index
    %28 = vector.load %arg9[%c0_21, %c0_22] : memref<1x8xf32, #tpu.memory_space<vmem>>, vector<1x8xf32>
    %29 = vector.broadcast %28 : vector<1x8xf32> to vector<4x8xf32>
    %30 = arith.addf %27, %29 : vector<4x8xf32>
    %31 = vector.extract_strided_slice %30 {offsets = [0, 0], sizes = [4, 4], strides = [1, 1]} : vector<4x8xf32> to vector<4x4xf32>
    %c0_23 = arith.constant 0 : index
    %c0_24 = arith.constant 0 : index
    %32 = vector.load %arg10[%c0_23, %c0_24] : memref<4x4xf32, #tpu.memory_space<vmem>>, vector<4x4xf32>
    tpu.vector_store %arg10[%c0_23, %c0_24], %31 {strides = array<i32>} : memref<4x4xf32, #tpu.memory_space<vmem>>, vector<4x4xf32>,
    %33 = vector.extract_strided_slice %30 {offsets = [0, 4], sizes = [4, 4], strides = [1, 1]} : vector<4x8xf32> to vector<4x4xf32>
    %cst_25 = arith.constant -2.000000e+01 : f32
    %cst_26 = arith.constant 2.000000e+00 : f32
    %34 = vector.broadcast %cst_25 : f32 to vector<4x4xf32>
    %35 = arith.maximumf %34, %33 : vector<4x4xf32>
    %36 = vector.broadcast %cst_26 : f32 to vector<4x4xf32>
    %37 = arith.minimumf %36, %35 : vector<4x4xf32>
    %38 = math.exp %37 : vector<4x4xf32>
    %c0_27 = arith.constant 0 : index
    %c0_28 = arith.constant 0 : index
    %39 = vector.load %arg11[%c0_27, %c0_28] : memref<4x4xf32, #tpu.memory_space<vmem>>, vector<4x4xf32>
    tpu.vector_store %arg11[%c0_27, %c0_28], %38 {strides = array<i32>} : memref<4x4xf32, #tpu.memory_space<vmem>>, vector<4x4xf32>,
    return
  }
  func.func @transform_0(%arg0: i32) -> (i32, i32) {
    %c0_i32 = arith.constant 0 : i32
    %c0_i32_0 = arith.constant 0 : i32
    return %arg0, %c0_i32 : i32, i32
  }
  func.func @transform_1(%arg0: i32) -> (i32, i32) {
    %c0_i32 = arith.constant 0 : i32
    %c0_i32_0 = arith.constant 0 : i32
    %c0_i32_1 = arith.constant 0 : i32
    return %c0_i32, %c0_i32_0 : i32, i32
  }
  func.func @transform_2(%arg0: i32) -> (i32, i32) {
    %c0_i32 = arith.constant 0 : i32
    %c0_i32_0 = arith.constant 0 : i32
    %c0_i32_1 = arith.constant 0 : i32
    return %c0_i32, %c0_i32_0 : i32, i32
  }
  func.func @transform_3(%arg0: i32) -> (i32, i32) {
    %c0_i32 = arith.constant 0 : i32
    %c0_i32_0 = arith.constant 0 : i32
    %c0_i32_1 = arith.constant 0 : i32
    return %c0_i32, %c0_i32_0 : i32, i32
  }
  func.func @transform_4(%arg0: i32) -> (i32, i32) {
    %c0_i32 = arith.constant 0 : i32
    %c0_i32_0 = arith.constant 0 : i32
    %c0_i32_1 = arith.constant 0 : i32
    return %c0_i32, %c0_i32_0 : i32, i32
  }
  func.func @transform_5(%arg0: i32) -> (i32, i32) {
    %c0_i32 = arith.constant 0 : i32
    %c0_i32_0 = arith.constant 0 : i32
    %c0_i32_1 = arith.constant 0 : i32
    return %c0_i32, %c0_i32_0 : i32, i32
  }
  func.func @transform_6(%arg0: i32) -> (i32, i32) {
    %c0_i32 = arith.constant 0 : i32
    %c0_i32_0 = arith.constant 0 : i32
    %c0_i32_1 = arith.constant 0 : i32
    return %c0_i32, %c0_i32_0 : i32, i32
  }
  func.func @transform_7(%arg0: i32) -> (i32, i32) {
    %c0_i32 = arith.constant 0 : i32
    %c0_i32_0 = arith.constant 0 : i32
    %c0_i32_1 = arith.constant 0 : i32
    return %c0_i32, %c0_i32_0 : i32, i32
  }
  func.func @transform_8(%arg0: i32) -> (i32, i32) {
    %c0_i32 = arith.constant 0 : i32
    %c0_i32_0 = arith.constant 0 : i32
    %c0_i32_1 = arith.constant 0 : i32
    return %c0_i32, %c0_i32_0 : i32, i32
  }
  func.func @transform_9(%arg0: i32) -> (i32, i32) {
    %c0_i32 = arith.constant 0 : i32
    %c0_i32_0 = arith.constant 0 : i32
    return %arg0, %c0_i32 : i32, i32
  }
  func.func @transform_10(%arg0: i32) -> (i32, i32) {
    %c0_i32 = arith.constant 0 : i32
    %c0_i32_0 = arith.constant 0 : i32
    return %arg0, %c0_i32 : i32, i32
  }
}

</mosaic_0001>

<llo_original>
// kernel: tpu_custom_call.1
$region0: #{tpu_custom_call.1}
  #allocation0 [shape = 'u32[]', space=smem, size = 0x4, offset = 0x4, fixed_abs, tag = 'smem constant byte address 0x4 - core index']
  #allocation1 [shape = 'u32[144,128]{1,0:T(1,128)}', space=vmem, size = 0x12000, scoped, tag = 'internal scratch']
  %s0 = inlined_call_operand.vmem [shape: f32[4,8], index: 0, kind: input, shape index: {}]
  %s1 = inlined_call_operand.vmem [shape: bf16[8,512], index: 1, kind: input, shape index: {}]
  %s2 = inlined_call_operand.vmem [shape: f32[1,512], index: 2, kind: input, shape index: {}]
  %s3 = inlined_call_operand.hbm [shape: bf16[512,512], index: 3, kind: input, shape index: {}]
  %s4 = inlined_call_operand.vmem [shape: f32[1,512], index: 4, kind: input, shape index: {}]
  %s5 = inlined_call_operand.hbm [shape: bf16[512,512], index: 5, kind: input, shape index: {}]
  %s6 = inlined_call_operand.vmem [shape: f32[1,512], index: 6, kind: input, shape index: {}]
  %s7 = inlined_call_operand.vmem [shape: bf16[512,8], index: 7, kind: input, shape index: {}]
  %s8 = inlined_call_operand.vmem [shape: f32[1,8], index: 8, kind: input, shape index: {}]
  %s9 = inlined_call_operand.hbm [shape: f32[4,4], index: 9, kind: output, shape index: {0}]
  %s10 = inlined_call_operand.hbm [shape: f32[4,4], index: 10, kind: output, shape index: {1}]
  %11 = xla_tuple %s9, %s10
  %s12 = sld [smem:[#allocation0]]
  $region62: #{tpu_custom_call.1} parent=0
    _
  %s14 = ssub.s32 1, %s12
  %s15 = scalar_select 0, %s14, %s12
  $region1: #{tpu_custom_call.1} parent=0
    #allocation2 [shape = 'u8[524288]{0}', space=vmem, size = 0x80000, scoped, tag = 'input window, operand 3, single buffered']
    #allocation3 [shape = 's32[1]{0}', space=sflag, size = 0x4, scoped, tag = 'scoped memory for tpu_custom_call.1']
    #allocation4 [shape = 's32[1]{0}', space=sflag, size = 0x4, scoped, tag = 'scoped memory for tpu_custom_call.1']
    #allocation5 [shape = 'u8[524288]{0}', space=vmem, size = 0x80000, scoped, tag = 'input window, operand 5, single buffered']
    #allocation6 [shape = 's32[1]{0}', space=sflag, size = 0x4, scoped, tag = 'scoped memory for tpu_custom_call.1']
    #allocation7 [shape = 'u8[2048]{0}', space=vmem, size = 0x800, scoped, tag = 'output window, operand 0, single buffered']
    #allocation8 [shape = 'u8[2048]{0}', space=vmem, size = 0x800, scoped, tag = 'output window, operand 1, single buffered']
    #allocation9 [shape = 's32[1]{0}', space=sflag, size = 0x4, scoped, tag = 'scoped memory for tpu_custom_call.1']
    %16 = vsyncpa [#allocation3], 0
    %17 = vsyncpa [#allocation6], 0
    %18 = vsyncpa [#allocation4], 0
    %19 = vsyncpa [#allocation9], 0
    // Predicated region
    $region2: #{tpu_custom_call.1} parent=1 // pred_check
      _
    $region3: #{tpu_custom_call.1} parent=1 // pred_check_branch
      %21 = sbr.rel (0) target = $region5
    $region4: #{tpu_custom_call.1} parent=1 // pred_region
      _
    $region5: #{tpu_custom_call.1} parent=1 // pred_fallthru
      _
    // Predicated region
    $region6: #{tpu_custom_call.1} parent=1 // pred_check
      _
    $region7: #{tpu_custom_call.1} parent=1 // pred_check_branch
      %23 = sbr.rel (0) target = $region9
    $region8: #{tpu_custom_call.1} parent=1 // pred_region
      _
    $region9: #{tpu_custom_call.1} parent=1 // pred_fallthru
      _
    // Predicated region
    $region10: #{tpu_custom_call.1} parent=1 // pred_check
      _
    $region11: #{tpu_custom_call.1} parent=1 // pred_check_branch
      %25 = sbr.rel (0) target = $region13
    $region12: #{tpu_custom_call.1} parent=1 // pred_region
      _
    $region13: #{tpu_custom_call.1} parent=1 // pred_fallthru
      _
    // Predicated region
    $region14: #{tpu_custom_call.1} parent=1 // pred_check
      _
    $region15: #{tpu_custom_call.1} parent=1 // pred_check_branch
      %27 = sbr.rel (0) target = $region17
    $region16: #{tpu_custom_call.1} parent=1 // pred_region
      %s29 = ssub.s32 16384, 16384
      %30 = vsyncadd [#allocation3], %s29
      %s31 = sshll.u32 [#allocation2], 4
      %s32 = int_to_ptr.vmem [resolvable:$true] %s31
      %37 = dma.hbm_to_vmem [thread:$0]  %s3, 16384, %s32, [#allocation3], 256, 256, 16
    $region17: #{tpu_custom_call.1} parent=1 // pred_fallthru
      _
    // Predicated region
    $region18: #{tpu_custom_call.1} parent=1 // pred_check
      _
    $region19: #{tpu_custom_call.1} parent=1 // pred_check_branch
      %39 = sbr.rel (0) target = $region21
    $region20: #{tpu_custom_call.1} parent=1 // pred_region
      _
    $region21: #{tpu_custom_call.1} parent=1 // pred_fallthru
      _
    // Predicated region
    $region22: #{tpu_custom_call.1} parent=1 // pred_check
      _
    $region23: #{tpu_custom_call.1} parent=1 // pred_check_branch
      %41 = sbr.rel (0) target = $region25
    $region24: #{tpu_custom_call.1} parent=1 // pred_region
      %s43 = ssub.s32 16384, 16384
      %44 = vsyncadd [#allocation6], %s43
      %s45 = sshll.u32 [#allocation5], 4
      %s46 = int_to_ptr.vmem [resolvable:$true] %s45
      %51 = dma.hbm_to_vmem [thread:$0]  %s5, 16384, %s46, [#allocation6], 256, 256, 16
    $region25: #{tpu_custom_call.1} parent=1 // pred_fallthru
      _
    // Predicated region
    $region26: #{tpu_custom_call.1} parent=1 // pred_check
      _
    $region27: #{tpu_custom_call.1} parent=1 // pred_check_branch
      %53 = sbr.rel (0) target = $region29
    $region28: #{tpu_custom_call.1} parent=1 // pred_region
      _
    $region29: #{tpu_custom_call.1} parent=1 // pred_fallthru
      _
    // Predicated region
    $region30: #{tpu_custom_call.1} parent=1 // pred_check
      _
    $region31: #{tpu_custom_call.1} parent=1 // pred_check_branch
      %55 = sbr.rel (0) target = $region33
    $region32: #{tpu_custom_call.1} parent=1 // pred_region
      _
    $region33: #{tpu_custom_call.1} parent=1 // pred_fallthru
      _
    // Predicated region
    $region34: #{tpu_custom_call.1} parent=1 // pred_check
      _
    $region35: #{tpu_custom_call.1} parent=1 // pred_check_branch
      %57 = sbr.rel (0) target = $region37
    $region36: #{tpu_custom_call.1} parent=1 // pred_region
      _
    $region37: #{tpu_custom_call.1} parent=1 // pred_fallthru
      _
    // Predicated region
    $region38: #{tpu_custom_call.1} parent=1 // pred_check
      _
    $region39: #{tpu_custom_call.1} parent=1 // pred_check_branch
      %59 = sbr.rel (0) target = $region41
    $region40: #{tpu_custom_call.1} parent=1 // pred_region
      %60 = dma.done [#allocation3], 16384
    $region41: #{tpu_custom_call.1} parent=1 // pred_fallthru
      _
    // Predicated region
    $region42: #{tpu_custom_call.1} parent=1 // pred_check
      _
    $region43: #{tpu_custom_call.1} parent=1 // pred_check_branch
      %62 = sbr.rel (0) target = $region45
    $region44: #{tpu_custom_call.1} parent=1 // pred_region
      %63 = dma.done [#allocation6], 16384
    $region45: #{tpu_custom_call.1} parent=1 // pred_fallthru
      _
    %v65 = vld [vmem:[%s0] sm:$0xf]
    %v66 = vpack.c.bf16 %v65, %v65
    %v67 = vld [vmem:[%s1] sm:$0xff]
    %v68 = vld [vmem:[%s1 + $0x8] sm:$0xff]
    %v69 = vld [vmem:[%s2] sm:$0xf]
    %v71 = vlaneseq
    %v72 = vshrl.u32 %v71, 7
    %v73 = vsub.s32 0, %v72
    %v74 = vrot.slane %v69, %v73
    %v75 = vlaneseq
    %v76 = vshrl.u32 %v75, 7
    %v77 = vsub.s32 1, %v76
    %v78 = vrot.slane %v69, %v77
    %v79 = vlaneseq
    %v80 = vshrl.u32 %v79, 7
    %v81 = vsub.s32 2, %v80
    %v82 = vrot.slane %v69, %v81
    %v83 = vlaneseq
    %v84 = vshrl.u32 %v83, 7
    %v85 = vsub.s32 3, %v84
    %v86 = vrot.slane %v69, %v85
    %v93 = vunpack.c.l.b16 %v67
    %v94 = vunpack.c.h.b16 %v67
    %v95 = vunpack.c.l.b16 %v68
    %v96 = vunpack.c.h.b16 %v68
    %v97 = vpack.c.b16 %v93, %v93
    %v98 = vpack.c.b16 %v94, %v94
    %v99 = vpack.c.b16 %v95, %v95
    %v100 = vpack.c.b16 %v96, %v96
    %vm101 = vcmask 64512
    %v103 = vsel %vm101, %v66, 0
    %vm105 = vcmask 1043456
    %v107 = vsel %vm105, %v97, 0
    %v110 = vsel %vm105, %v98, 0
    %v113 = vsel %vm105, %v99, 0
    %v116 = vsel %vm105, %v100, 0
    %118 = vmatprep.subr.bf16.mxu0 %v110
    %119 = vmatpush1.bf16.msra.mxu0 %v107
    %120 = vmatprep.subr.bf16.mxu0 0
    %121 = vmatpush1.bf16.msra.mxu0 0
    %122 = vmatprep.subr.bf16.mxu0 0
    %123 = vmatpush1.bf16.msra.mxu0 0
    %124 = vmatprep.subr.bf16.mxu0 0
    %125 = vmatpush1.bf16.msra.mxu0 0
    %126 = vmatprep.subr.bf16.mxu0 0
    %127 = vmatpush1.bf16.msra.mxu0 0
    %128 = vmatprep.subr.bf16.mxu0 0
    %129 = vmatpush1.bf16.msra.mxu0 0
    %130 = vmatprep.subr.bf16.mxu0 0
    %131 = vmatpush1.bf16.msra.mxu0 0
    %132 = vmatprep.subr.bf16.mxu0 0
    %133 = vmatpush1.bf16.msra.mxu0 0
    %134 = vmatprep.subr.bf16.mxu0 0
    %135 = vmatpush1.bf16.msra.mxu0 0
    %136 = vmatprep.subr.bf16.mxu0 0
    %137 = vmatpush1.bf16.msra.mxu0 0
    %138 = vmatprep.subr.bf16.mxu0 0
    %139 = vmatpush1.bf16.msra.mxu0 0
    %140 = vmatprep.subr.bf16.mxu0 0
    %141 = vmatpush1.bf16.msra.mxu0 0
    %142 = vmatprep.subr.bf16.mxu0 0
    %143 = vmatpush1.bf16.msra.mxu0 0
    %144 = vmatprep.subr.bf16.mxu0 0
    %145 = vmatpush1.bf16.msra.mxu0 0
    %146 = vmatprep.subr.bf16.mxu0 0
    %147 = vmatpush1.bf16.msra.mxu0 0
    %148 = vmatprep.subr.bf16.mxu0 0
    %149 = vmatpush1.bf16.msra.mxu0 0
    %150 = vmatprep.mubr.bf16.mxu0 0
    %151 = vmatmul.mubr.bf16.gmra.mrb[0].mxu0 %v103
    %v152 = vpop.f32.mrb[0].mxu0
    %v153 = vadd.f32 %v74, %v152
    %v154 = vpop.f32.mrb[0].mxu0
    %v155 = vadd.f32 %v78, %v154
    %v156 = vpop.f32.mrb[0].mxu0
    %v157 = vpop.f32.mrb[0].mxu0
    %158 = vdwg.mxu0
    %159 = vmatprep.subr.bf16.mxu0 %v116
    %160 = vmatpush1.bf16.msra.mxu0 %v113
    %161 = vmatprep.subr.bf16.mxu0 0
    %162 = vmatpush1.bf16.msra.mxu0 0
    %163 = vmatprep.subr.bf16.mxu0 0
    %164 = vmatpush1.bf16.msra.mxu0 0
    %165 = vmatprep.subr.bf16.mxu0 0
    %166 = vmatpush1.bf16.msra.mxu0 0
    %167 = vmatprep.subr.bf16.mxu0 0
    %168 = vmatpush1.bf16.msra.mxu0 0
    %169 = vmatprep.subr.bf16.mxu0 0
    %170 = vmatpush1.bf16.msra.mxu0 0
    %171 = vmatprep.subr.bf16.mxu0 0
    %172 = vmatpush1.bf16.msra.mxu0 0
    %173 = vmatprep.subr.bf16.mxu0 0
    %174 = vmatpush1.bf16.msra.mxu0 0
    %175 = vmatprep.subr.bf16.mxu0 0
    %176 = vmatpush1.bf16.msra.mxu0 0
    %177 = vmatprep.subr.bf16.mxu0 0
    %178 = vmatpush1.bf16.msra.mxu0 0
    %179 = vmatprep.subr.bf16.mxu0 0
    %180 = vmatpush1.bf16.msra.mxu0 0
    %181 = vmatprep.subr.bf16.mxu0 0
    %182 = vmatpush1.bf16.msra.mxu0 0
    %183 = vmatprep.subr.bf16.mxu0 0
    %184 = vmatpush1.bf16.msra.mxu0 0
    %185 = vmatprep.subr.bf16.mxu0 0
    %186 = vmatpush1.bf16.msra.mxu0 0
    %187 = vmatprep.subr.bf16.mxu0 0
    %188 = vmatpush1.bf16.msra.mxu0 0
    %189 = vmatprep.subr.bf16.mxu0 0
    %190 = vmatpush1.bf16.msra.mxu0 0
    %191 = vmatprep.mubr.bf16.mxu0 0
    %192 = vmatmul.mubr.bf16.gmra.mrb[0].mxu0 %v103
    %v193 = vpop.f32.mrb[0].mxu0
    %v194 = vadd.f32 %v82, %v193
    %v195 = vpop.f32.mrb[0].mxu0
    %v196 = vadd.f32 %v86, %v195
    %v197 = vpop.f32.mrb[0].mxu0
    %v198 = vpop.f32.mrb[0].mxu0
    %199 = vdwg.mxu0
    %v200 = vmax.f32 %v153, 0.0
    %v201 = vmax.f32 %v155, 0.0
    %v202 = vmax.f32 %v194, 0.0
    %v203 = vmax.f32 %v196, 0.0
    %v204 = vpack.c.bf16 %v200, %v200
    %v205 = vpack.c.bf16 %v201, %v201
    %v206 = vpack.c.bf16 %v202, %v202
    %v207 = vpack.c.bf16 %v203, %v203
    %v208 = vld [vmem:[#allocation2] sm:$0xff]
    %v209 = vld [vmem:[#allocation2 + $0x8] sm:$0xff]
    %v210 = vld [vmem:[#allocation2 + $0x10] sm:$0xff]
    %v211 = vld [vmem:[#allocation2 + $0x18] sm:$0xff]
    %v212 = vld [vmem:[#allocation2 + $0x20] sm:$0xff]
    %v213 = vld [vmem:[#allocation2 + $0x28] sm:$0xff]
    %v214 = vld [vmem:[#allocation2 + $0x30] sm:$0xff]
    %v215 = vld [vmem:[#allocation2 + $0x38] sm:$0xff]
    %v216 = vld [vmem:[#allocation2 + $0x40] sm:$0xff]
    %v217 = vld [vmem:[#allocation2 + $0x48] sm:$0xff]
    %v218 = vld [vmem:[#allocation2 + $0x50] sm:$0xff]
    %v219 = vld [vmem:[#allocation2 + $0x58] sm:$0xff]
    %v220 = vld [vmem:[#allocation2 + $0x60] sm:$0xff]
    %v221 = vld [vmem:[#allocation2 + $0x68] sm:$0xff]
    %v222 = vld [vmem:[#allocation2 + $0x70] sm:$0xff]
    %v223 = vld [vmem:[#allocation2 + $0x78] sm:$0xff]
    %v224 = vld [vmem:[#allocation2 + $0x80] sm:$0xff]
    %v225 = vld [vmem:[#allocation2 + $0x88] sm:$0xff]
    %v226 = vld [vmem:[#allocation2 + $0x90] sm:$0xff]
    %v227 = vld [vmem:[#allocation2 + $0x98] sm:$0xff]
    %v228 = vld [vmem:[#allocation2 + $0xa0] sm:$0xff]
    %v229 = vld [vmem:[#allocation2 + $0xa8] sm:$0xff]
    %v230 = vld [vmem:[#allocation2 + $0xb0] sm:$0xff]
    %v231 = vld [vmem:[#allocation2 + $0xb8] sm:$0xff]
    %v232 = vld [vmem:[#allocation2 + $0xc0] sm:$0xff]
    %v233 = vld [vmem:[#allocation2 + $0xc8] sm:$0xff]
    %v234 = vld [vmem:[#allocation2 + $0xd0] sm:$0xff]
    %v235 = vld [vmem:[#allocation2 + $0xd8] sm:$0xff]
    %v236 = vld [vmem:[#allocation2 + $0xe0] sm:$0xff]
    %v237 = vld [vmem:[#allocation2 + $0xe8] sm:$0xff]
    %v238 = vld [vmem:[#allocation2 + $0xf0] sm:$0xff]
    %v239 = vld [vmem:[#allocation2 + $0xf8] sm:$0xff]
    %v240 = vld [vmem:[#allocation2 + $0x100] sm:$0xff]
    %v241 = vld [vmem:[#allocation2 + $0x108] sm:$0xff]
    %v242 = vld [vmem:[#allocation2 + $0x110] sm:$0xff]
    %v243 = vld [vmem:[#allocation2 + $0x118] sm:$0xff]
    %v244 = vld [vmem:[#allocation2 + $0x120] sm:$0xff]
    %v245 = vld [vmem:[#allocation2 + $0x128] sm:$0xff]
    %v246 = vld [vmem:[#allocation2 + $0x130] sm:$0xff]
    %v247 = vld [vmem:[#allocation2 + $0x138] sm:$0xff]
    %v248 = vld [vmem:[#allocation2 + $0x140] sm:$0xff]
    %v249 = vld [vmem:[#allocation2 + $0x148] sm:$0xff]
    %v250 = vld [vmem:[#allocation2 + $0x150] sm:$0xff]
    %v251 = vld [vmem:[#allocation2 + $0x158] sm:$0xff]
    %v252 = vld [vmem:[#allocation2 + $0x160] sm:$0xff]
    %v253 = vld [vmem:[#allocation2 + $0x168] sm:$0xff]
    %v254 = vld [vmem:[#allocation2 + $0x170] sm:$0xff]
    %v255 = vld [vmem:[#allocation2 + $0x178] sm:$0xff]
    %v256 = vld [vmem:[#allocation2 + $0x180] sm:$0xff]
    %v257 = vld [vmem:[#allocation2 + $0x188] sm:$0xff]
    %v258 = vld [vmem:[#allocation2 + $0x190] sm:$0xff]
    %v259 = vld [vmem:[#allocation2 + $0x198] sm:$0xff]
    %v260 = vld [vmem:[#allocation2 + $0x1a0] sm:$0xff]
    %v261 = vld [vmem:[#allocation2 + $0x1a8] sm:$0xff]
    %v262 = vld [vmem:[#allocation2 + $0x1b0] sm:$0xff]
    %v263 = vld [vmem:[#allocation2 + $0x1b8] sm:$0xff]
    %v264 = vld [vmem:[#allocation2 + $0x1c0] sm:$0xff]
    %v265 = vld [vmem:[#allocation2 + $0x1c8] sm:$0xff]
    %v266 = vld [vmem:[#allocation2 + $0x1d0] sm:$0xff]
    %v267 = vld [vmem:[#allocation2 + $0x1d8] sm:$0xff]
    %v268 = vld [vmem:[#allocation2 + $0x1e0] sm:$0xff]
    %v269 = vld [vmem:[#allocation2 + $0x1e8] sm:$0xff]
    %v270 = vld [vmem:[#allocation2 + $0x1f0] sm:$0xff]
    %v271 = vld [vmem:[#allocation2 + $0x1f8] sm:$0xff]
    %v272 = vld [vmem:[#allocation2 + $0x200] sm:$0xff]
    %v273 = vld [vmem:[#allocation2 + $0x208] sm:$0xff]
    %v274 = vld [vmem:[#allocation2 + $0x210] sm:$0xff]
    %v275 = vld [vmem:[#allocation2 + $0x218] sm:$0xff]
    %v276 = vld [vmem:[#allocation2 + $0x220] sm:$0xff]
    %v277 = vld [vmem:[#allocation2 + $0x228] sm:$0xff]
    %v278 = vld [vmem:[#allocation2 + $0x230] sm:$0xff]
    %v279 = vld [vmem:[#allocation2 + $0x238] sm:$0xff]
    %v280 = vld [vmem:[#allocation2 + $0x240] sm:$0xff]
    %v281 = vld [vmem:[#allocation2 + $0x248] sm:$0xff]
    %v282 = vld [vmem:[#allocation2 + $0x250] sm:$0xff]
    %v283 = vld [vmem:[#allocation2 + $0x258] sm:$0xff]
    %v284 = vld [vmem:[#allocation2 + $0x260] sm:$0xff]
    %v285 = vld [vmem:[#allocation2 + $0x268] sm:$0xff]
    %v286 = vld [vmem:[#allocation2 + $0x270] sm:$0xff]
    %v287 = vld [vmem:[#allocation2 + $0x278] sm:$0xff]
    %v288 = vld [vmem:[#allocation2 + $0x280] sm:$0xff]
    %v289 = vld [vmem:[#allocation2 + $0x288] sm:$0xff]
    %v290 = vld [vmem:[#allocation2 + $0x290] sm:$0xff]
    %v291 = vld [vmem:[#allocation2 + $0x298] sm:$0xff]
    %v292 = vld [vmem:[#allocation2 + $0x2a0] sm:$0xff]
    %v293 = vld [vmem:[#allocation2 + $0x2a8] sm:$0xff]
    %v294 = vld [vmem:[#allocation2 + $0x2b0] sm:$0xff]
    %v295 = vld [vmem:[#allocation2 + $0x2b8] sm:$0xff]
    %v296 = vld [vmem:[#allocation2 + $0x2c0] sm:$0xff]
    %v297 = vld [vmem:[#allocation2 + $0x2c8] sm:$0xff]
    %v298 = vld [vmem:[#allocation2 + $0x2d0] sm:$0xff]
    %v299 = vld [vmem:[#allocation2 + $0x2d8] sm:$0xff]
    %v300 = vld [vmem:[#allocation2 + $0x2e0] sm:$0xff]
    %v301 = vld [vmem:[#allocation2 + $0x2e8] sm:$0xff]
    %v302 = vld [vmem:[#allocation2 + $0x2f0] sm:$0xff]
    %v303 = vld [vmem:[#allocation2 + $0x2f8] sm:$0xff]
    %v304 = vld [vmem:[#allocation2 + $0x300] sm:$0xff]
    %v305 = vld [vmem:[#allocation2 + $0x308] sm:$0xff]
    %v306 = vld [vmem:[#allocation2 + $0x310] sm:$0xff]
    %v307 = vld [vmem:[#allocation2 + $0x318] sm:$0xff]
    %v308 = vld [vmem:[#allocation2 + $0x320] sm:$0xff]
    %v309 = vld [vmem:[#allocation2 + $0x328] sm:$0xff]
    %v310 = vld [vmem:[#allocation2 + $0x330] sm:$0xff]
    %v311 = vld [vmem:[#allocation2 + $0x338] sm:$0xff]
    %v312 = vld [vmem:[#allocation2 + $0x340] sm:$0xff]
    %v313 = vld [vmem:[#allocation2 + $0x348] sm:$0xff]
    %v314 = vld [vmem:[#allocation2 + $0x350] sm:$0xff]
    %v315 = vld [vmem:[#allocation2 + $0x358] sm:$0xff]
    %v316 = vld [vmem:[#allocation2 + $0x360] sm:$0xff]
    %v317 = vld [vmem:[#allocation2 + $0x368] sm:$0xff]
    %v318 = vld [vmem:[#allocation2 + $0x370] sm:$0xff]
    %v319 = vld [vmem:[#allocation2 + $0x378] sm:$0xff]
    %v320 = vld [vmem:[#allocation2 + $0x380] sm:$0xff]
    %v321 = vld [vmem:[#allocation2 + $0x388] sm:$0xff]
    %v322 = vld [vmem:[#allocation2 + $0x390] sm:$0xff]
    %v323 = vld [vmem:[#allocation2 + $0x398] sm:$0xff]
    %v324 = vld [vmem:[#allocation2 + $0x3a0] sm:$0xff]
    %v325 = vld [vmem:[#allocation2 + $0x3a8] sm:$0xff]
    %v326 = vld [vmem:[#allocation2 + $0x3b0] sm:$0xff]
    %v327 = vld [vmem:[#allocation2 + $0x3b8] sm:$0xff]
    %v328 = vld [vmem:[#allocation2 + $0x3c0] sm:$0xff]
    %v329 = vld [vmem:[#allocation2 + $0x3c8] sm:$0xff]
    %v330 = vld [vmem:[#allocation2 + $0x3d0] sm:$0xff]
    %v331 = vld [vmem:[#allocation2 + $0x3d8] sm:$0xff]
    %v332 = vld [vmem:[#allocation2 + $0x3e0] sm:$0xff]
    %v333 = vld [vmem:[#allocation2 + $0x3e8] sm:$0xff]
    %v334 = vld [vmem:[#allocation2 + $0x3f0] sm:$0xff]
    %v335 = vld [vmem:[#allocation2 + $0x3f8] sm:$0xff]
    %v336 = vld [vmem:[%s4] sm:$0xf]
    %v338 = vlaneseq
    %v339 = vshrl.u32 %v338, 7
    %v340 = vsub.s32 0, %v339
    %v341 = vrot.slane %v336, %v340
    %v342 = vlaneseq
    %v343 = vshrl.u32 %v342, 7
    %v344 = vsub.s32 1, %v343
    %v345 = vrot.slane %v336, %v344
    %v346 = vlaneseq
    %v347 = vshrl.u32 %v346, 7
    %v348 = vsub.s32 2, %v347
    %v349 = vrot.slane %v336, %v348
    %v350 = vlaneseq
    %v351 = vshrl.u32 %v350, 7
    %v352 = vsub.s32 3, %v351
    %v353 = vrot.slane %v336, %v352
    %v486 = vunpack.c.l.b16 %v208
    %v487 = vunpack.c.h.b16 %v208
    %v488 = vunpack.c.l.b16 %v209
    %v489 = vunpack.c.h.b16 %v209
    %v490 = vunpack.c.l.b16 %v210
    %v491 = vunpack.c.h.b16 %v210
    %v492 = vunpack.c.l.b16 %v211
    %v493 = vunpack.c.h.b16 %v211
    %v494 = vunpack.c.l.b16 %v212
    %v495 = vunpack.c.h.b16 %v212
    %v496 = vunpack.c.l.b16 %v213
    %v497 = vunpack.c.h.b16 %v213
    %v498 = vunpack.c.l.b16 %v214
    %v499 = vunpack.c.h.b16 %v214
    %v500 = vunpack.c.l.b16 %v215
    %v501 = vunpack.c.h.b16 %v215
    %v502 = vunpack.c.l.b16 %v216
    %v503 = vunpack.c.h.b16 %v216
    %v504 = vunpack.c.l.b16 %v217
    %v505 = vunpack.c.h.b16 %v217
    %v506 = vunpack.c.l.b16 %v218
    %v507 = vunpack.c.h.b16 %v218
    %v508 = vunpack.c.l.b16 %v219
    %v509 = vunpack.c.h.b16 %v219
    %v510 = vunpack.c.l.b16 %v220
    %v511 = vunpack.c.h.b16 %v220
    %v512 = vunpack.c.l.b16 %v221
    %v513 = vunpack.c.h.b16 %v221
    %v514 = vunpack.c.l.b16 %v222
    %v515 = vunpack.c.h.b16 %v222
    %v516 = vunpack.c.l.b16 %v223
    %v517 = vunpack.c.h.b16 %v223
    %v518 = vunpack.c.l.b16 %v224
    %v519 = vunpack.c.h.b16 %v224
    %v520 = vunpack.c.l.b16 %v225
    %v521 = vunpack.c.h.b16 %v225
    %v522 = vunpack.c.l.b16 %v226
    %v523 = vunpack.c.h.b16 %v226
    %v524 = vunpack.c.l.b16 %v227
    %v525 = vunpack.c.h.b16 %v227
    %v526 = vunpack.c.l.b16 %v228
    %v527 = vunpack.c.h.b16 %v228
    %v528 = vunpack.c.l.b16 %v229
    %v529 = vunpack.c.h.b16 %v229
    %v530 = vunpack.c.l.b16 %v230
    %v531 = vunpack.c.h.b16 %v230
    %v532 = vunpack.c.l.b16 %v231
    %v533 = vunpack.c.h.b16 %v231
    %v534 = vunpack.c.l.b16 %v232
    %v535 = vunpack.c.h.b16 %v232
    %v536 = vunpack.c.l.b16 %v233
    %v537 = vunpack.c.h.b16 %v233
    %v538 = vunpack.c.l.b16 %v234
    %v539 = vunpack.c.h.b16 %v234
    %v540 = vunpack.c.l.b16 %v235
    %v541 = vunpack.c.h.b16 %v235
    %v542 = vunpack.c.l.b16 %v236
    %v543 = vunpack.c.h.b16 %v236
    %v544 = vunpack.c.l.b16 %v237
    %v545 = vunpack.c.h.b16 %v237
    %v546 = vunpack.c.l.b16 %v238
    %v547 = vunpack.c.h.b16 %v238
    %v548 = vunpack.c.l.b16 %v239
    %v549 = vunpack.c.h.b16 %v239
    %v550 = vunpack.c.l.b16 %v240
    %v551 = vunpack.c.h.b16 %v240
    %v552 = vunpack.c.l.b16 %v241
    %v553 = vunpack.c.h.b16 %v241
    %v554 = vunpack.c.l.b16 %v242
    %v555 = vunpack.c.h.b16 %v242
    %v556 = vunpack.c.l.b16 %v243
    %v557 = vunpack.c.h.b16 %v243
    %v558 = vunpack.c.l.b16 %v244
    %v559 = vunpack.c.h.b16 %v244
    %v560 = vunpack.c.l.b16 %v245
    %v561 = vunpack.c.h.b16 %v245
    %v562 = vunpack.c.l.b16 %v246
    %v563 = vunpack.c.h.b16 %v246
    %v564 = vunpack.c.l.b16 %v247
    %v565 = vunpack.c.h.b16 %v247
    %v566 = vunpack.c.l.b16 %v248
    %v567 = vunpack.c.h.b16 %v248
    %v568 = vunpack.c.l.b16 %v249
    %v569 = vunpack.c.h.b16 %v249
    %v570 = vunpack.c.l.b16 %v250
    %v571 = vunpack.c.h.b16 %v250
    %v572 = vunpack.c.l.b16 %v251
    %v573 = vunpack.c.h.b16 %v251
    %v574 = vunpack.c.l.b16 %v252
    %v575 = vunpack.c.h.b16 %v252
    %v576 = vunpack.c.l.b16 %v253
    %v577 = vunpack.c.h.b16 %v253
    %v578 = vunpack.c.l.b16 %v254
    %v579 = vunpack.c.h.b16 %v254
    %v580 = vunpack.c.l.b16 %v255
    %v581 = vunpack.c.h.b16 %v255
    %v582 = vunpack.c.l.b16 %v256
    %v583 = vunpack.c.h.b16 %v256
    %v584 = vunpack.c.l.b16 %v257
    %v585 = vunpack.c.h.b16 %v257
    %v586 = vunpack.c.l.b16 %v258
    %v587 = vunpack.c.h.b16 %v258
    %v588 = vunpack.c.l.b16 %v259
    %v589 = vunpack.c.h.b16 %v259
    %v590 = vunpack.c.l.b16 %v260
    %v591 = vunpack.c.h.b16 %v260
    %v592 = vunpack.c.l.b16 %v261
    %v593 = vunpack.c.h.b16 %v261
    %v594 = vunpack.c.l.b16 %v262
    %v595 = vunpack.c.h.b16 %v262
    %v596 = vunpack.c.l.b16 %v263
    %v597 = vunpack.c.h.b16 %v263
    %v598 = vunpack.c.l.b16 %v264
    %v599 = vunpack.c.h.b16 %v264
    %v600 = vunpack.c.l.b16 %v265
    %v601 = vunpack.c.h.b16 %v265
    %v602 = vunpack.c.l.b16 %v266
    %v603 = vunpack.c.h.b16 %v266
    %v604 = vunpack.c.l.b16 %v267
    %v605 = vunpack.c.h.b16 %v267
    %v606 = vunpack.c.l.b16 %v268
    %v607 = vunpack.c.h.b16 %v268
    %v608 = vunpack.c.l.b16 %v269
    %v609 = vunpack.c.h.b16 %v269
    %v610 = vunpack.c.l.b16 %v270
    %v611 = vunpack.c.h.b16 %v270
    %v612 = vunpack.c.l.b16 %v271
    %v613 = vunpack.c.h.b16 %v271
    %v614 = vunpack.c.l.b16 %v272
    %v615 = vunpack.c.h.b16 %v272
    %v616 = vunpack.c.l.b16 %v273
    %v617 = vunpack.c.h.b16 %v273
    %v618 = vunpack.c.l.b16 %v274
    %v619 = vunpack.c.h.b16 %v274
    %v620 = vunpack.c.l.b16 %v275
    %v621 = vunpack.c.h.b16 %v275
    %v622 = vunpack.c.l.b16 %v276
    %v623 = vunpack.c.h.b16 %v276
    %v624 = vunpack.c.l.b16 %v277
    %v625 = vunpack.c.h.b16 %v277
    %v626 = vunpack.c.l.b16 %v278
    %v627 = vunpack.c.h.b16 %v278
    %v628 = vunpack.c.l.b16 %v279
    %v629 = vunpack.c.h.b16 %v279
    %v630 = vunpack.c.l.b16 %v280
    %v631 = vunpack.c.h.b16 %v280
    %v632 = vunpack.c.l.b16 %v281
    %v633 = vunpack.c.h.b16 %v281
    %v634 = vunpack.c.l.b16 %v282
    %v635 = vunpack.c.h.b16 %v282
    %v636 = vunpack.c.l.b16 %v283
    %v637 = vunpack.c.h.b16 %v283
    %v638 = vunpack.c.l.b16 %v284
    %v639 = vunpack.c.h.b16 %v284
    %v640 = vunpack.c.l.b16 %v285
    %v641 = vunpack.c.h.b16 %v285
    %v642 = vunpack.c.l.b16 %v286
    %v643 = vunpack.c.h.b16 %v286
    %v644 = vunpack.c.l.b16 %v287
    %v645 = vunpack.c.h.b16 %v287
    %v646 = vunpack.c.l.b16 %v288
    %v647 = vunpack.c.h.b16 %v288
    %v648 = vunpack.c.l.b16 %v289
    %v649 = vunpack.c.h.b16 %v289
    %v650 = vunpack.c.l.b16 %v290
    %v651 = vunpack.c.h.b16 %v290
    %v652 = vunpack.c.l.b16 %v291
    %v653 = vunpack.c.h.b16 %v291
    %v654 = vunpack.c.l.b16 %v292
    %v655 = vunpack.c.h.b16 %v292
    %v656 = vunpack.c.l.b16 %v293
    %v657 = vunpack.c.h.b16 %v293
    %v658 = vunpack.c.l.b16 %v294
    %v659 = vunpack.c.h.b16 %v294
    %v660 = vunpack.c.l.b16 %v295
    %v661 = vunpack.c.h.b16 %v295
    %v662 = vunpack.c.l.b16 %v296
    %v663 = vunpack.c.h.b16 %v296
    %v664 = vunpack.c.l.b16 %v297
    %v665 = vunpack.c.h.b16 %v297
    %v666 = vunpack.c.l.b16 %v298
    %v667 = vunpack.c.h.b16 %v298
    %v668 = vunpack.c.l.b16 %v299
    %v669 = vunpack.c.h.b16 %v299
    %v670 = vunpack.c.l.b16 %v300
    %v671 = vunpack.c.h.b16 %v300
    %v672 = vunpack.c.l.b16 %v301
    %v673 = vunpack.c.h.b16 %v301
    %v674 = vunpack.c.l.b16 %v302
    %v675 = vunpack.c.h.b16 %v302
    %v676 = vunpack.c.l.b16 %v303
    %v677 = vunpack.c.h.b16 %v303
    %v678 = vunpack.c.l.b16 %v304
    %v679 = vunpack.c.h.b16 %v304
    %v680 = vunpack.c.l.b16 %v305
    %v681 = vunpack.c.h.b16 %v305
    %v682 = vunpack.c.l.b16 %v306
    %v683 = vunpack.c.h.b16 %v306
    %v684 = vunpack.c.l.b16 %v307
    %v685 = vunpack.c.h.b16 %v307
    %v686 = vunpack.c.l.b16 %v308
    %v687 = vunpack.c.h.b16 %v308
    %v688 = vunpack.c.l.b16 %v309
    %v689 = vunpack.c.h.b16 %v309
    %v690 = vunpack.c.l.b16 %v310
    %v691 = vunpack.c.h.b16 %v310
    %v692 = vunpack.c.l.b16 %v311
    %v693 = vunpack.c.h.b16 %v311
    %v694 = vunpack.c.l.b16 %v312
    %v695 = vunpack.c.h.b16 %v312
    %v696 = vunpack.c.l.b16 %v313
    %v697 = vunpack.c.h.b16 %v313
    %v698 = vunpack.c.l.b16 %v314
    %v699 = vunpack.c.h.b16 %v314
    %v700 = vunpack.c.l.b16 %v315
    %v701 = vunpack.c.h.b16 %v315
    %v702 = vunpack.c.l.b16 %v316
    %v703 = vunpack.c.h.b16 %v316
    %v704 = vunpack.c.l.b16 %v317
    %v705 = vunpack.c.h.b16 %v317
    %v706 = vunpack.c.l.b16 %v318
    %v707 = vunpack.c.h.b16 %v318
    %v708 = vunpack.c.l.b16 %v319
    %v709 = vunpack.c.h.b16 %v319
    %v710 = vunpack.c.l.b16 %v320
    %v711 = vunpack.c.h.b16 %v320
    %v712 = vunpack.c.l.b16 %v321
    %v713 = vunpack.c.h.b16 %v321
    %v714 = vunpack.c.l.b16 %v322
    %v715 = vunpack.c.h.b16 %v322
    %v716 = vunpack.c.l.b16 %v323
    %v717 = vunpack.c.h.b16 %v323
    %v718 = vunpack.c.l.b16 %v324
    %v719 = vunpack.c.h.b16 %v324
    %v720 = vunpack.c.l.b16 %v325
    %v721 = vunpack.c.h.b16 %v325
    %v722 = vunpack.c.l.b16 %v326
    %v723 = vunpack.c.h.b16 %v326
    %v724 = vunpack.c.l.b16 %v327
    %v725 = vunpack.c.h.b16 %v327
    %v726 = vunpack.c.l.b16 %v328
    %v727 = vunpack.c.h.b16 %v328
    %v728 = vunpack.c.l.b16 %v329
    %v729 = vunpack.c.h.b16 %v329
    %v730 = vunpack.c.l.b16 %v330
    %v731 = vunpack.c.h.b16 %v330
    %v732 = vunpack.c.l.b16 %v331
    %v733 = vunpack.c.h.b16 %v331
    %v734 = vunpack.c.l.b16 %v332
    %v735 = vunpack.c.h.b16 %v332
    %v736 = vunpack.c.l.b16 %v333
    %v737 = vunpack.c.h.b16 %v333
    %v738 = vunpack.c.l.b16 %v334
    %v739 = vunpack.c.h.b16 %v334
    %v740 = vunpack.c.l.b16 %v335
    %v741 = vunpack.c.h.b16 %v335
    %v742 = vpack.c.b16 %v490, %v486
    %v743 = vpack.c.b16 %v491, %v487
    %v744 = vpack.c.b16 %v492, %v488
    %v745 = vpack.c.b16 %v493, %v489
    %v746 = vpack.c.b16 %v498, %v494
    %v747 = vpack.c.b16 %v499, %v495
    %v748 = vpack.c.b16 %v500, %v496
    %v749 = vpack.c.b16 %v501, %v497
    %v750 = vpack.c.b16 %v506, %v502
    %v751 = vpack.c.b16 %v507, %v503
    %v752 = vpack.c.b16 %v508, %v504
    %v753 = vpack.c.b16 %v509, %v505
    %v754 = vpack.c.b16 %v514, %v510
    %v755 = vpack.c.b16 %v515, %v511
    %v756 = vpack.c.b16 %v516, %v512
    %v757 = vpack.c.b16 %v517, %v513
    %v758 = vpack.c.b16 %v522, %v518
    %v759 = vpack.c.b16 %v523, %v519
    %v760 = vpack.c.b16 %v524, %v520
    %v761 = vpack.c.b16 %v525, %v521
    %v762 = vpack.c.b16 %v530, %v526
    %v763 = vpack.c.b16 %v531, %v527
    %v764 = vpack.c.b16 %v532, %v528
    %v765 = vpack.c.b16 %v533, %v529
    %v766 = vpack.c.b16 %v538, %v534
    %v767 = vpack.c.b16 %v539, %v535
    %v768 = vpack.c.b16 %v540, %v536
    %v769 = vpack.c.b16 %v541, %v537
    %v770 = vpack.c.b16 %v546, %v542
    %v771 = vpack.c.b16 %v547, %v543
    %v772 = vpack.c.b16 %v548, %v544
    %v773 = vpack.c.b16 %v549, %v545
    %v774 = vpack.c.b16 %v554, %v550
    %v775 = vpack.c.b16 %v555, %v551
    %v776 = vpack.c.b16 %v556, %v552
    %v777 = vpack.c.b16 %v557, %v553
    %v778 = vpack.c.b16 %v562, %v558
    %v779 = vpack.c.b16 %v563, %v559
    %v780 = vpack.c.b16 %v564, %v560
    %v781 = vpack.c.b16 %v565, %v561
    %v782 = vpack.c.b16 %v570, %v566
    %v783 = vpack.c.b16 %v571, %v567
    %v784 = vpack.c.b16 %v572, %v568
    %v785 = vpack.c.b16 %v573, %v569
    %v786 = vpack.c.b16 %v578, %v574
    %v787 = vpack.c.b16 %v579, %v575
    %v788 = vpack.c.b16 %v580, %v576
    %v789 = vpack.c.b16 %v581, %v577
    %v790 = vpack.c.b16 %v586, %v582
    %v791 = vpack.c.b16 %v587, %v583
    %v792 = vpack.c.b16 %v588, %v584
    %v793 = vpack.c.b16 %v589, %v585
    %v794 = vpack.c.b16 %v594, %v590
    %v795 = vpack.c.b16 %v595, %v591
    %v796 = vpack.c.b16 %v596, %v592
    %v797 = vpack.c.b16 %v597, %v593
    %v798 = vpack.c.b16 %v602, %v598
    %v799 = vpack.c.b16 %v603, %v599
    %v800 = vpack.c.b16 %v604, %v600
    %v801 = vpack.c.b16 %v605, %v601
    %v802 = vpack.c.b16 %v610, %v606
    %v803 = vpack.c.b16 %v611, %v607
    %v804 = vpack.c.b16 %v612, %v608
    %v805 = vpack.c.b16 %v613, %v609
    %v806 = vpack.c.b16 %v618, %v614
    %v807 = vpack.c.b16 %v619, %v615
    %v808 = vpack.c.b16 %v620, %v616
    %v809 = vpack.c.b16 %v621, %v617
    %v810 = vpack.c.b16 %v626, %v622
    %v811 = vpack.c.b16 %v627, %v623
    %v812 = vpack.c.b16 %v628, %v624
    %v813 = vpack.c.b16 %v629, %v625
    %v814 = vpack.c.b16 %v634, %v630
    %v815 = vpack.c.b16 %v635, %v631
    %v816 = vpack.c.b16 %v636, %v632
    %v817 = vpack.c.b16 %v637, %v633
    %v818 = vpack.c.b16 %v642, %v638
    %v819 = vpack.c.b16 %v643, %v639
    %v820 = vpack.c.b16 %v644, %v640
    %v821 = vpack.c.b16 %v645, %v641
    %v822 = vpack.c.b16 %v650, %v646
    %v823 = vpack.c.b16 %v651, %v647
    %v824 = vpack.c.b16 %v652, %v648
    %v825 = vpack.c.b16 %v653, %v649
    %v826 = vpack.c.b16 %v658, %v654
    %v827 = vpack.c.b16 %v659, %v655
    %v828 = vpack.c.b16 %v660, %v656
    %v829 = vpack.c.b16 %v661, %v657
    %v830 = vpack.c.b16 %v666, %v662
    %v831 = vpack.c.b16 %v667, %v663
    %v832 = vpack.c.b16 %v668, %v664
    %v833 = vpack.c.b16 %v669, %v665
    %v834 = vpack.c.b16 %v674, %v670
    %v835 = vpack.c.b16 %v675, %v671
    %v836 = vpack.c.b16 %v676, %v672
    %v837 = vpack.c.b16 %v677, %v673
    %v838 = vpack.c.b16 %v682, %v678
    %v839 = vpack.c.b16 %v683, %v679
    %v840 = vpack.c.b16 %v684, %v680
    %v841 = vpack.c.b16 %v685, %v681
    %v842 = vpack.c.b16 %v690, %v686
    %v843 = vpack.c.b16 %v691, %v687
    %v844 = vpack.c.b16 %v692, %v688
    %v845 = vpack.c.b16 %v693, %v689
    %v846 = vpack.c.b16 %v698, %v694
    %v847 = vpack.c.b16 %v699, %v695
    %v848 = vpack.c.b16 %v700, %v696
    %v849 = vpack.c.b16 %v701, %v697
    %v850 = vpack.c.b16 %v706, %v702
    %v851 = vpack.c.b16 %v707, %v703
    %v852 = vpack.c.b16 %v708, %v704
    %v853 = vpack.c.b16 %v709, %v705
    %v854 = vpack.c.b16 %v714, %v710
    %v855 = vpack.c.b16 %v715, %v711
    %v856 = vpack.c.b16 %v716, %v712
    %v857 = vpack.c.b16 %v717, %v713
    %v858 = vpack.c.b16 %v722, %v718
    %v859 = vpack.c.b16 %v723, %v719
    %v860 = vpack.c.b16 %v724, %v720
    %v861 = vpack.c.b16 %v725, %v721
    %v862 = vpack.c.b16 %v730, %v726
    %v863 = vpack.c.b16 %v731, %v727
    %v864 = vpack.c.b16 %v732, %v728
    %v865 = vpack.c.b16 %v733, %v729
    %v866 = vpack.c.b16 %v738, %v734
    %v867 = vpack.c.b16 %v739, %v735
    %v868 = vpack.c.b16 %v740, %v736
    %v869 = vpack.c.b16 %v741, %v737
    %998 = vmatprep.subr.bf16.mxu0 %v743
    %999 = vmatpush1.bf16.msra.mxu0 %v742
    %1000 = vmatprep.subr.bf16.mxu0 %v747
    %1001 = vmatpush1.bf16.msra.mxu0 %v746
    %1002 = vmatprep.subr.bf16.mxu0 %v751
    %1003 = vmatpush1.bf16.msra.mxu0 %v750
    %1004 = vmatprep.subr.bf16.mxu0 %v755
    %1005 = vmatpush1.bf16.msra.mxu0 %v754
    %1006 = vmatprep.subr.bf16.mxu0 %v759
    %1007 = vmatpush1.bf16.msra.mxu0 %v758
    %1008 = vmatprep.subr.bf16.mxu0 %v763
    %1009 = vmatpush1.bf16.msra.mxu0 %v762
    %1010 = vmatprep.subr.bf16.mxu0 %v767
    %1011 = vmatpush1.bf16.msra.mxu0 %v766
    %1012 = vmatprep.subr.bf16.mxu0 %v771
    %1013 = vmatpush1.bf16.msra.mxu0 %v770
    %1014 = vmatprep.subr.bf16.mxu0 %v775
    %1015 = vmatpush1.bf16.msra.mxu0 %v774
    %1016 = vmatprep.subr.bf16.mxu0 %v779
    %1017 = vmatpush1.bf16.msra.mxu0 %v778
    %1018 = vmatprep.subr.bf16.mxu0 %v783
    %1019 = vmatpush1.bf16.msra.mxu0 %v782
    %1020 = vmatprep.subr.bf16.mxu0 %v787
    %1021 = vmatpush1.bf16.msra.mxu0 %v786
    %1022 = vmatprep.subr.bf16.mxu0 %v791
    %1023 = vmatpush1.bf16.msra.mxu0 %v790
    %1024 = vmatprep.subr.bf16.mxu0 %v795
    %1025 = vmatpush1.bf16.msra.mxu0 %v794
    %1026 = vmatprep.subr.bf16.mxu0 %v799
    %1027 = vmatpush1.bf16.msra.mxu0 %v798
    %1028 = vmatprep.subr.bf16.mxu0 %v803
    %1029 = vmatpush1.bf16.msra.mxu0 %v802
    %1030 = vmatprep.mubr.bf16.mxu0 %v205
    %1031 = vmatmul.mubr.bf16.gmra.mrb[0].mxu0 %v204
    %v1032 = vpop.f32.mrb[0].mxu0
    %v1033 = vadd.f32 %v341, %v1032
    %v1034 = vpop.f32.mrb[0].mxu0
    %v1035 = vadd.f32 %v345, %v1034
    %v1036 = vpop.f32.mrb[0].mxu0
    %v1037 = vpop.f32.mrb[0].mxu0
    %1038 = vdwg.mxu0
    %1039 = vmatprep.subr.bf16.mxu0 %v807
    %1040 = vmatpush1.bf16.msra.mxu0 %v806
    %1041 = vmatprep.subr.bf16.mxu0 %v811
    %1042 = vmatpush1.bf16.msra.mxu0 %v810
    %1043 = vmatprep.subr.bf16.mxu0 %v815
    %1044 = vmatpush1.bf16.msra.mxu0 %v814
    %1045 = vmatprep.subr.bf16.mxu0 %v819
    %1046 = vmatpush1.bf16.msra.mxu0 %v818
    %1047 = vmatprep.subr.bf16.mxu0 %v823
    %1048 = vmatpush1.bf16.msra.mxu0 %v822
    %1049 = vmatprep.subr.bf16.mxu0 %v827
    %1050 = vmatpush1.bf16.msra.mxu0 %v826
    %1051 = vmatprep.subr.bf16.mxu0 %v831
    %1052 = vmatpush1.bf16.msra.mxu0 %v830
    %1053 = vmatprep.subr.bf16.mxu0 %v835
    %1054 = vmatpush1.bf16.msra.mxu0 %v834
    %1055 = vmatprep.subr.bf16.mxu0 %v839
    %1056 = vmatpush1.bf16.msra.mxu0 %v838
    %1057 = vmatprep.subr.bf16.mxu0 %v843
    %1058 = vmatpush1.bf16.msra.mxu0 %v842
    %1059 = vmatprep.subr.bf16.mxu0 %v847
    %1060 = vmatpush1.bf16.msra.mxu0 %v846
    %1061 = vmatprep.subr.bf16.mxu0 %v851
    %1062 = vmatpush1.bf16.msra.mxu0 %v850
    %1063 = vmatprep.subr.bf16.mxu0 %v855
    %1064 = vmatpush1.bf16.msra.mxu0 %v854
    %1065 = vmatprep.subr.bf16.mxu0 %v859
    %1066 = vmatpush1.bf16.msra.mxu0 %v858
    %1067 = vmatprep.subr.bf16.mxu0 %v863
    %1068 = vmatpush1.bf16.msra.mxu0 %v862
    %1069 = vmatprep.subr.bf16.mxu0 %v867
    %1070 = vmatpush1.bf16.msra.mxu0 %v866
    %1071 = vmatprep.mubr.bf16.mxu0 %v207
    %1072 = vmatmul.mubr.bf16.gmra.mrb[0].mxu0 %v206
    %v1073 = vpop.f32.mrb[0].mxu0
    %v1074 = vadd.f32 %v1033, %v1073
    %v1075 = vpop.f32.mrb[0].mxu0
    %v1076 = vadd.f32 %v1035, %v1075
    %v1077 = vpop.f32.mrb[0].mxu0
    %v1078 = vpop.f32.mrb[0].mxu0
    %1079 = vdwg.mxu0
    %1080 = vmatprep.subr.bf16.mxu0 %v745
    %1081 = vmatpush1.bf16.msra.mxu0 %v744
    %1082 = vmatprep.subr.bf16.mxu0 %v749
    %1083 = vmatpush1.bf16.msra.mxu0 %v748
    %1084 = vmatprep.subr.bf16.mxu0 %v753
    %1085 = vmatpush1.bf16.msra.mxu0 %v752
    %1086 = vmatprep.subr.bf16.mxu0 %v757
    %1087 = vmatpush1.bf16.msra.mxu0 %v756
    %1088 = vmatprep.subr.bf16.mxu0 %v761
    %1089 = vmatpush1.bf16.msra.mxu0 %v760
    %1090 = vmatprep.subr.bf16.mxu0 %v765
    %1091 = vmatpush1.bf16.msra.mxu0 %v764
    %1092 = vmatprep.subr.bf16.mxu0 %v769
    %1093 = vmatpush1.bf16.msra.mxu0 %v768
    %1094 = vmatprep.subr.bf16.mxu0 %v773
    %1095 = vmatpush1.bf16.msra.mxu0 %v772
    %1096 = vmatprep.subr.bf16.mxu0 %v777
    %1097 = vmatpush1.bf16.msra.mxu0 %v776
    %1098 = vmatprep.subr.bf16.mxu0 %v781
    %1099 = vmatpush1.bf16.msra.mxu0 %v780
    %1100 = vmatprep.subr.bf16.mxu0 %v785
    %1101 = vmatpush1.bf16.msra.mxu0 %v784
    %1102 = vmatprep.subr.bf16.mxu0 %v789
    %1103 = vmatpush1.bf16.msra.mxu0 %v788
    %1104 = vmatprep.subr.bf16.mxu0 %v793
    %1105 = vmatpush1.bf16.msra.mxu0 %v792
    %1106 = vmatprep.subr.bf16.mxu0 %v797
    %1107 = vmatpush1.bf16.msra.mxu0 %v796
    %1108 = vmatprep.subr.bf16.mxu0 %v801
    %1109 = vmatpush1.bf16.msra.mxu0 %v800
    %1110 = vmatprep.subr.bf16.mxu0 %v805
    %1111 = vmatpush1.bf16.msra.mxu0 %v804
    %1112 = vmatprep.mubr.bf16.mxu0 %v205
    %1113 = vmatmul.mubr.bf16.gmra.mrb[0].mxu0 %v204
    %v1114 = vpop.f32.mrb[0].mxu0
    %v1115 = vadd.f32 %v349, %v1114
    %v1116 = vpop.f32.mrb[0].mxu0
    %v1117 = vadd.f32 %v353, %v1116
    %v1118 = vpop.f32.mrb[0].mxu0
    %v1119 = vpop.f32.mrb[0].mxu0
    %1120 = vdwg.mxu0
    %1121 = vmatprep.subr.bf16.mxu0 %v809
    %1122 = vmatpush1.bf16.msra.mxu0 %v808
    %1123 = vmatprep.subr.bf16.mxu0 %v813
    %1124 = vmatpush1.bf16.msra.mxu0 %v812
    %1125 = vmatprep.subr.bf16.mxu0 %v817
    %1126 = vmatpush1.bf16.msra.mxu0 %v816
    %1127 = vmatprep.subr.bf16.mxu0 %v821
    %1128 = vmatpush1.bf16.msra.mxu0 %v820
    %1129 = vmatprep.subr.bf16.mxu0 %v825
    %1130 = vmatpush1.bf16.msra.mxu0 %v824
    %1131 = vmatprep.subr.bf16.mxu0 %v829
    %1132 = vmatpush1.bf16.msra.mxu0 %v828
    %1133 = vmatprep.subr.bf16.mxu0 %v833
    %1134 = vmatpush1.bf16.msra.mxu0 %v832
    %1135 = vmatprep.subr.bf16.mxu0 %v837
    %1136 = vmatpush1.bf16.msra.mxu0 %v836
    %1137 = vmatprep.subr.bf16.mxu0 %v841
    %1138 = vmatpush1.bf16.msra.mxu0 %v840
    %1139 = vmatprep.subr.bf16.mxu0 %v845
    %1140 = vmatpush1.bf16.msra.mxu0 %v844
    %1141 = vmatprep.subr.bf16.mxu0 %v849
    %1142 = vmatpush1.bf16.msra.mxu0 %v848
    %1143 = vmatprep.subr.bf16.mxu0 %v853
    %1144 = vmatpush1.bf16.msra.mxu0 %v852
    %1145 = vmatprep.subr.bf16.mxu0 %v857
    %1146 = vmatpush1.bf16.msra.mxu0 %v856
    %1147 = vmatprep.subr.bf16.mxu0 %v861
    %1148 = vmatpush1.bf16.msra.mxu0 %v860
    %1149 = vmatprep.subr.bf16.mxu0 %v865
    %1150 = vmatpush1.bf16.msra.mxu0 %v864
    %1151 = vmatprep.subr.bf16.mxu0 %v869
    %1152 = vmatpush1.bf16.msra.mxu0 %v868
    %1153 = vmatprep.mubr.bf16.mxu0 %v207
    %1154 = vmatmul.mubr.bf16.gmra.mrb[0].mxu0 %v206
    %v1155 = vpop.f32.mrb[0].mxu0
    %v1156 = vadd.f32 %v1115, %v1155
    %v1157 = vpop.f32.mrb[0].mxu0
    %v1158 = vadd.f32 %v1117, %v1157
    %v1159 = vpop.f32.mrb[0].mxu0
    %v1160 = vpop.f32.mrb[0].mxu0
    %1161 = vdwg.mxu0
    %v1162 = vmax.f32 %v1074, 0.0
    %v1163 = vmax.f32 %v1076, 0.0
    %v1164 = vmax.f32 %v1156, 0.0
    %v1165 = vmax.f32 %v1158, 0.0
    %v1166 = vpack.c.bf16 %v1162, %v1162
    %v1167 = vpack.c.bf16 %v1163, %v1163
    %v1168 = vpack.c.bf16 %v1164, %v1164
    %v1169 = vpack.c.bf16 %v1165, %v1165
    %v1170 = vld [vmem:[#allocation5] sm:$0xff]
    %v1171 = vld [vmem:[#allocation5 + $0x8] sm:$0xff]
    %v1172 = vld [vmem:[#allocation5 + $0x10] sm:$0xff]
    %v1173 = vld [vmem:[#allocation5 + $0x18] sm:$0xff]
    %v1174 = vld [vmem:[#allocation5 + $0x20] sm:$0xff]
    %v1175 = vld [vmem:[#allocation5 + $0x28] sm:$0xff]
    %v1176 = vld [vmem:[#allocation5 + $0x30] sm:$0xff]
    %v1177 = vld [vmem:[#allocation5 + $0x38] sm:$0xff]
    %v1178 = vld [vmem:[#allocation5 + $0x40] sm:$0xff]
    %v1179 = vld [vmem:[#allocation5 + $0x48] sm:$0xff]
    %v1180 = vld [vmem:[#allocation5 + $0x50] sm:$0xff]
    %v1181 = vld [vmem:[#allocation5 + $0x58] sm:$0xff]
    %v1182 = vld [vmem:[#allocation5 + $0x60] sm:$0xff]
    %v1183 = vld [vmem:[#allocation5 + $0x68] sm:$0xff]
    %v1184 = vld [vmem:[#allocation5 + $0x70] sm:$0xff]
    %v1185 = vld [vmem:[#allocation5 + $0x78] sm:$0xff]
    %v1186 = vld [vmem:[#allocation5 + $0x80] sm:$0xff]
    %v1187 = vld [vmem:[#allocation5 + $0x88] sm:$0xff]
    %v1188 = vld [vmem:[#allocation5 + $0x90] sm:$0xff]
    %v1189 = vld [vmem:[#allocation5 + $0x98] sm:$0xff]
    %v1190 = vld [vmem:[#allocation5 + $0xa0] sm:$0xff]
    %v1191 = vld [vmem:[#allocation5 + $0xa8] sm:$0xff]
    %v1192 = vld [vmem:[#allocation5 + $0xb0] sm:$0xff]
    %v1193 = vld [vmem:[#allocation5 + $0xb8] sm:$0xff]
    %v1194 = vld [vmem:[#allocation5 + $0xc0] sm:$0xff]
    %v1195 = vld [vmem:[#allocation5 + $0xc8] sm:$0xff]
    %v1196 = vld [vmem:[#allocation5 + $0xd0] sm:$0xff]
    %v1197 = vld [vmem:[#allocation5 + $0xd8] sm:$0xff]
    %v1198 = vld [vmem:[#allocation5 + $0xe0] sm:$0xff]
    %v1199 = vld [vmem:[#allocation5 + $0xe8] sm:$0xff]
    %v1200 = vld [vmem:[#allocation5 + $0xf0] sm:$0xff]
    %v1201 = vld [vmem:[#allocation5 + $0xf8] sm:$0xff]
    %v1202 = vld [vmem:[#allocation5 + $0x100] sm:$0xff]
    %v1203 = vld [vmem:[#allocation5 + $0x108] sm:$0xff]
    %v1204 = vld [vmem:[#allocation5 + $0x110] sm:$0xff]
    %v1205 = vld [vmem:[#allocation5 + $0x118] sm:$0xff]
    %v1206 = vld [vmem:[#allocation5 + $0x120] sm:$0xff]
    %v1207 = vld [vmem:[#allocation5 + $0x128] sm:$0xff]
    %v1208 = vld [vmem:[#allocation5 + $0x130] sm:$0xff]
    %v1209 = vld [vmem:[#allocation5 + $0x138] sm:$0xff]
    %v1210 = vld [vmem:[#allocation5 + $0x140] sm:$0xff]
    %v1211 = vld [vmem:[#allocation5 + $0x148] sm:$0xff]
    %v1212 = vld [vmem:[#allocation5 + $0x150] sm:$0xff]
    %v1213 = vld [vmem:[#allocation5 + $0x158] sm:$0xff]
    %v1214 = vld [vmem:[#allocation5 + $0x160] sm:$0xff]
    %v1215 = vld [vmem:[#allocation5 + $0x168] sm:$0xff]
    %v1216 = vld [vmem:[#allocation5 + $0x170] sm:$0xff]
    %v1217 = vld [vmem:[#allocation5 + $0x178] sm:$0xff]
    %v1218 = vld [vmem:[#allocation5 + $0x180] sm:$0xff]
    %v1219 = vld [vmem:[#allocation5 + $0x188] sm:$0xff]
    %v1220 = vld [vmem:[#allocation5 + $0x190] sm:$0xff]
    %v1221 = vld [vmem:[#allocation5 + $0x198] sm:$0xff]
    %v1222 = vld [vmem:[#allocation5 + $0x1a0] sm:$0xff]
    %v1223 = vld [vmem:[#allocation5 + $0x1a8] sm:$0xff]
    %v1224 = vld [vmem:[#allocation5 + $0x1b0] sm:$0xff]
    %v1225 = vld [vmem:[#allocation5 + $0x1b8] sm:$0xff]
    %v1226 = vld [vmem:[#allocation5 + $0x1c0] sm:$0xff]
    %v1227 = vld [vmem:[#allocation5 + $0x1c8] sm:$0xff]
    %v1228 = vld [vmem:[#allocation5 + $0x1d0] sm:$0xff]
    %v1229 = vld [vmem:[#allocation5 + $0x1d8] sm:$0xff]
    %v1230 = vld [vmem:[#allocation5 + $0x1e0] sm:$0xff]
    %v1231 = vld [vmem:[#allocation5 + $0x1e8] sm:$0xff]
    %v1232 = vld [vmem:[#allocation5 + $0x1f0] sm:$0xff]
    %v1233 = vld [vmem:[#allocation5 + $0x1f8] sm:$0xff]
    %v1234 = vld [vmem:[#allocation5 + $0x200] sm:$0xff]
    %v1235 = vld [vmem:[#allocation5 + $0x208] sm:$0xff]
    %v1236 = vld [vmem:[#allocation5 + $0x210] sm:$0xff]
    %v1237 = vld [vmem:[#allocation5 + $0x218] sm:$0xff]
    %v1238 = vld [vmem:[#allocation5 + $0x220] sm:$0xff]
    %v1239 = vld [vmem:[#allocation5 + $0x228] sm:$0xff]
    %v1240 = vld [vmem:[#allocation5 + $0x230] sm:$0xff]
    %v1241 = vld [vmem:[#allocation5 + $0x238] sm:$0xff]
    %v1242 = vld [vmem:[#allocation5 + $0x240] sm:$0xff]
    %v1243 = vld [vmem:[#allocation5 + $0x248] sm:$0xff]
    %v1244 = vld [vmem:[#allocation5 + $0x250] sm:$0xff]
    %v1245 = vld [vmem:[#allocation5 + $0x258] sm:$0xff]
    %v1246 = vld [vmem:[#allocation5 + $0x260] sm:$0xff]
    %v1247 = vld [vmem:[#allocation5 + $0x268] sm:$0xff]
    %v1248 = vld [vmem:[#allocation5 + $0x270] sm:$0xff]
    %v1249 = vld [vmem:[#allocation5 + $0x278] sm:$0xff]
    %v1250 = vld [vmem:[#allocation5 + $0x280] sm:$0xff]
    %v1251 = vld [vmem:[#allocation5 + $0x288] sm:$0xff]
    %v1252 = vld [vmem:[#allocation5 + $0x290] sm:$0xff]
    %v1253 = vld [vmem:[#allocation5 + $0x298] sm:$0xff]
    %v1254 = vld [vmem:[#allocation5 + $0x2a0] sm:$0xff]
    %v1255 = vld [vmem:[#allocation5 + $0x2a8] sm:$0xff]
    %v1256 = vld [vmem:[#allocation5 + $0x2b0] sm:$0xff]
    %v1257 = vld [vmem:[#allocation5 + $0x2b8] sm:$0xff]
    %v1258 = vld [vmem:[#allocation5 + $0x2c0] sm:$0xff]
    %v1259 = vld [vmem:[#allocation5 + $0x2c8] sm:$0xff]
    %v1260 = vld [vmem:[#allocation5 + $0x2d0] sm:$0xff]
    %v1261 = vld [vmem:[#allocation5 + $0x2d8] sm:$0xff]
    %v1262 = vld [vmem:[#allocation5 + $0x2e0] sm:$0xff]
    %v1263 = vld [vmem:[#allocation5 + $0x2e8] sm:$0xff]
    %v1264 = vld [vmem:[#allocation5 + $0x2f0] sm:$0xff]
    %v1265 = vld [vmem:[#allocation5 + $0x2f8] sm:$0xff]
    %v1266 = vld [vmem:[#allocation5 + $0x300] sm:$0xff]
    %v1267 = vld [vmem:[#allocation5 + $0x308] sm:$0xff]
    %v1268 = vld [vmem:[#allocation5 + $0x310] sm:$0xff]
    %v1269 = vld [vmem:[#allocation5 + $0x318] sm:$0xff]
    %v1270 = vld [vmem:[#allocation5 + $0x320] sm:$0xff]
    %v1271 = vld [vmem:[#allocation5 + $0x328] sm:$0xff]
    %v1272 = vld [vmem:[#allocation5 + $0x330] sm:$0xff]
    %v1273 = vld [vmem:[#allocation5 + $0x338] sm:$0xff]
    %v1274 = vld [vmem:[#allocation5 + $0x340] sm:$0xff]
    %v1275 = vld [vmem:[#allocation5 + $0x348] sm:$0xff]
    %v1276 = vld [vmem:[#allocation5 + $0x350] sm:$0xff]
    %v1277 = vld [vmem:[#allocation5 + $0x358] sm:$0xff]
    %v1278 = vld [vmem:[#allocation5 + $0x360] sm:$0xff]
    %v1279 = vld [vmem:[#allocation5 + $0x368] sm:$0xff]
    %v1280 = vld [vmem:[#allocation5 + $0x370] sm:$0xff]
    %v1281 = vld [vmem:[#allocation5 + $0x378] sm:$0xff]
    %v1282 = vld [vmem:[#allocation5 + $0x380] sm:$0xff]
    %v1283 = vld [vmem:[#allocation5 + $0x388] sm:$0xff]
    %v1284 = vld [vmem:[#allocation5 + $0x390] sm:$0xff]
    %v1285 = vld [vmem:[#allocation5 + $0x398] sm:$0xff]
    %v1286 = vld [vmem:[#allocation5 + $0x3a0] sm:$0xff]
    %v1287 = vld [vmem:[#allocation5 + $0x3a8] sm:$0xff]
    %v1288 = vld [vmem:[#allocation5 + $0x3b0] sm:$0xff]
    %v1289 = vld [vmem:[#allocation5 + $0x3b8] sm:$0xff]
    %v1290 = vld [vmem:[#allocation5 + $0x3c0] sm:$0xff]
    %v1291 = vld [vmem:[#allocation5 + $0x3c8] sm:$0xff]
    %v1292 = vld [vmem:[#allocation5 + $0x3d0] sm:$0xff]
    %v1293 = vld [vmem:[#allocation5 + $0x3d8] sm:$0xff]
    %v1294 = vld [vmem:[#allocation5 + $0x3e0] sm:$0xff]
    %v1295 = vld [vmem:[#allocation5 + $0x3e8] sm:$0xff]
    %v1296 = vld [vmem:[#allocation5 + $0x3f0] sm:$0xff]
    %v1297 = vld [vmem:[#allocation5 + $0x3f8] sm:$0xff]
    %v1298 = vld [vmem:[%s6] sm:$0xf]
    %v1300 = vlaneseq
    %v1301 = vshrl.u32 %v1300, 7
    %v1302 = vsub.s32 0, %v1301
    %v1303 = vrot.slane %v1298, %v1302
    %v1304 = vlaneseq
    %v1305 = vshrl.u32 %v1304, 7
    %v1306 = vsub.s32 1, %v1305
    %v1307 = vrot.slane %v1298, %v1306
    %v1308 = vlaneseq
    %v1309 = vshrl.u32 %v1308, 7
    %v1310 = vsub.s32 2, %v1309
    %v1311 = vrot.slane %v1298, %v1310
    %v1312 = vlaneseq
    %v1313 = vshrl.u32 %v1312, 7
    %v1314 = vsub.s32 3, %v1313
    %v1315 = vrot.slane %v1298, %v1314
    %v1448 = vunpack.c.l.b16 %v1170
    %v1449 = vunpack.c.h.b16 %v1170
    %v1450 = vunpack.c.l.b16 %v1171
    %v1451 = vunpack.c.h.b16 %v1171
    %v1452 = vunpack.c.l.b16 %v1172
    %v1453 = vunpack.c.h.b16 %v1172
    %v1454 = vunpack.c.l.b16 %v1173
    %v1455 = vunpack.c.h.b16 %v1173
    %v1456 = vunpack.c.l.b16 %v1174
    %v1457 = vunpack.c.h.b16 %v1174
    %v1458 = vunpack.c.l.b16 %v1175
    %v1459 = vunpack.c.h.b16 %v1175
    %v1460 = vunpack.c.l.b16 %v1176
    %v1461 = vunpack.c.h.b16 %v1176
    %v1462 = vunpack.c.l.b16 %v1177
    %v1463 = vunpack.c.h.b16 %v1177
    %v1464 = vunpack.c.l.b16 %v1178
    %v1465 = vunpack.c.h.b16 %v1178
    %v1466 = vunpack.c.l.b16 %v1179
    %v1467 = vunpack.c.h.b16 %v1179
    %v1468 = vunpack.c.l.b16 %v1180
    %v1469 = vunpack.c.h.b16 %v1180
    %v1470 = vunpack.c.l.b16 %v1181
    %v1471 = vunpack.c.h.b16 %v1181
    %v1472 = vunpack.c.l.b16 %v1182
    %v1473 = vunpack.c.h.b16 %v1182
    %v1474 = vunpack.c.l.b16 %v1183
    %v1475 = vunpack.c.h.b16 %v1183
    %v1476 = vunpack.c.l.b16 %v1184
    %v1477 = vunpack.c.h.b16 %v1184
    %v1478 = vunpack.c.l.b16 %v1185
    %v1479 = vunpack.c.h.b16 %v1185
    %v1480 = vunpack.c.l.b16 %v1186
    %v1481 = vunpack.c.h.b16 %v1186
    %v1482 = vunpack.c.l.b16 %v1187
    %v1483 = vunpack.c.h.b16 %v1187
    %v1484 = vunpack.c.l.b16 %v1188
    %v1485 = vunpack.c.h.b16 %v1188
    %v1486 = vunpack.c.l.b16 %v1189
    %v1487 = vunpack.c.h.b16 %v1189
    %v1488 = vunpack.c.l.b16 %v1190
    %v1489 = vunpack.c.h.b16 %v1190
    %v1490 = vunpack.c.l.b16 %v1191
    %v1491 = vunpack.c.h.b16 %v1191
    %v1492 = vunpack.c.l.b16 %v1192
    %v1493 = vunpack.c.h.b16 %v1192
    %v1494 = vunpack.c.l.b16 %v1193
    %v1495 = vunpack.c.h.b16 %v1193
    %v1496 = vunpack.c.l.b16 %v1194
    %v1497 = vunpack.c.h.b16 %v1194
    %v1498 = vunpack.c.l.b16 %v1195
    %v1499 = vunpack.c.h.b16 %v1195
    %v1500 = vunpack.c.l.b16 %v1196
    %v1501 = vunpack.c.h.b16 %v1196
    %v1502 = vunpack.c.l.b16 %v1197
    %v1503 = vunpack.c.h.b16 %v1197
    %v1504 = vunpack.c.l.b16 %v1198
    %v1505 = vunpack.c.h.b16 %v1198
    %v1506 = vunpack.c.l.b16 %v1199
    %v1507 = vunpack.c.h.b16 %v1199
    %v1508 = vunpack.c.l.b16 %v1200
    %v1509 = vunpack.c.h.b16 %v1200
    %v1510 = vunpack.c.l.b16 %v1201
    %v1511 = vunpack.c.h.b16 %v1201
    %v1512 = vunpack.c.l.b16 %v1202
    %v1513 = vunpack.c.h.b16 %v1202
    %v1514 = vunpack.c.l.b16 %v1203
    %v1515 = vunpack.c.h.b16 %v1203
    %v1516 = vunpack.c.l.b16 %v1204
    %v1517 = vunpack.c.h.b16 %v1204
    %v1518 = vunpack.c.l.b16 %v1205
    %v1519 = vunpack.c.h.b16 %v1205
    %v1520 = vunpack.c.l.b16 %v1206
    %v1521 = vunpack.c.h.b16 %v1206
    %v1522 = vunpack.c.l.b16 %v1207
    %v1523 = vunpack.c.h.b16 %v1207
    %v1524 = vunpack.c.l.b16 %v1208
    %v1525 = vunpack.c.h.b16 %v1208
    %v1526 = vunpack.c.l.b16 %v1209
    %v1527 = vunpack.c.h.b16 %v1209
    %v1528 = vunpack.c.l.b16 %v1210
    %v1529 = vunpack.c.h.b16 %v1210
    %v1530 = vunpack.c.l.b16 %v1211
    %v1531 = vunpack.c.h.b16 %v1211
    %v1532 = vunpack.c.l.b16 %v1212
    %v1533 = vunpack.c.h.b16 %v1212
    %v1534 = vunpack.c.l.b16 %v1213
    %v1535 = vunpack.c.h.b16 %v1213
    %v1536 = vunpack.c.l.b16 %v1214
    %v1537 = vunpack.c.h.b16 %v1214
    %v1538 = vunpack.c.l.b16 %v1215
    %v1539 = vunpack.c.h.b16 %v1215
    %v1540 = vunpack.c.l.b16 %v1216
    %v1541 = vunpack.c.h.b16 %v1216
    %v1542 = vunpack.c.l.b16 %v1217
    %v1543 = vunpack.c.h.b16 %v1217
    %v1544 = vunpack.c.l.b16 %v1218
    %v1545 = vunpack.c.h.b16 %v1218
    %v1546 = vunpack.c.l.b16 %v1219
    %v1547 = vunpack.c.h.b16 %v1219
    %v1548 = vunpack.c.l.b16 %v1220
    %v1549 = vunpack.c.h.b16 %v1220
    %v1550 = vunpack.c.l.b16 %v1221
    %v1551 = vunpack.c.h.b16 %v1221
    %v1552 = vunpack.c.l.b16 %v1222
    %v1553 = vunpack.c.h.b16 %v1222
    %v1554 = vunpack.c.l.b16 %v1223
    %v1555 = vunpack.c.h.b16 %v1223
    %v1556 = vunpack.c.l.b16 %v1224
    %v1557 = vunpack.c.h.b16 %v1224
    %v1558 = vunpack.c.l.b16 %v1225
    %v1559 = vunpack.c.h.b16 %v1225
    %v1560 = vunpack.c.l.b16 %v1226
    %v1561 = vunpack.c.h.b16 %v1226
    %v1562 = vunpack.c.l.b16 %v1227
    %v1563 = vunpack.c.h.b16 %v1227
    %v1564 = vunpack.c.l.b16 %v1228
    %v1565 = vunpack.c.h.b16 %v1228
    %v1566 = vunpack.c.l.b16 %v1229
    %v1567 = vunpack.c.h.b16 %v1229
    %v1568 = vunpack.c.l.b16 %v1230
    %v1569 = vunpack.c.h.b16 %v1230
    %v1570 = vunpack.c.l.b16 %v1231
    %v1571 = vunpack.c.h.b16 %v1231
    %v1572 = vunpack.c.l.b16 %v1232
    %v1573 = vunpack.c.h.b16 %v1232
    %v1574 = vunpack.c.l.b16 %v1233
    %v1575 = vunpack.c.h.b16 %v1233
    %v1576 = vunpack.c.l.b16 %v1234
    %v1577 = vunpack.c.h.b16 %v1234
    %v1578 = vunpack.c.l.b16 %v1235
    %v1579 = vunpack.c.h.b16 %v1235
    %v1580 = vunpack.c.l.b16 %v1236
    %v1581 = vunpack.c.h.b16 %v1236
    %v1582 = vunpack.c.l.b16 %v1237
    %v1583 = vunpack.c.h.b16 %v1237
    %v1584 = vunpack.c.l.b16 %v1238
    %v1585 = vunpack.c.h.b16 %v1238
    %v1586 = vunpack.c.l.b16 %v1239
    %v1587 = vunpack.c.h.b16 %v1239
    %v1588 = vunpack.c.l.b16 %v1240
    %v1589 = vunpack.c.h.b16 %v1240
    %v1590 = vunpack.c.l.b16 %v1241
    %v1591 = vunpack.c.h.b16 %v1241
    %v1592 = vunpack.c.l.b16 %v1242
    %v1593 = vunpack.c.h.b16 %v1242
    %v1594 = vunpack.c.l.b16 %v1243
    %v1595 = vunpack.c.h.b16 %v1243
    %v1596 = vunpack.c.l.b16 %v1244
    %v1597 = vunpack.c.h.b16 %v1244
    %v1598 = vunpack.c.l.b16 %v1245
    %v1599 = vunpack.c.h.b16 %v1245
    %v1600 = vunpack.c.l.b16 %v1246
    %v1601 = vunpack.c.h.b16 %v1246
    %v1602 = vunpack.c.l.b16 %v1247
    %v1603 = vunpack.c.h.b16 %v1247
    %v1604 = vunpack.c.l.b16 %v1248
    %v1605 = vunpack.c.h.b16 %v1248
    %v1606 = vunpack.c.l.b16 %v1249
    %v1607 = vunpack.c.h.b16 %v1249
    %v1608 = vunpack.c.l.b16 %v1250
    %v1609 = vunpack.c.h.b16 %v1250
    %v1610 = vunpack.c.l.b16 %v1251
    %v1611 = vunpack.c.h.b16 %v1251
    %v1612 = vunpack.c.l.b16 %v1252
    %v1613 = vunpack.c.h.b16 %v1252
    %v1614 = vunpack.c.l.b16 %v1253
    %v1615 = vunpack.c.h.b16 %v1253
    %v1616 = vunpack.c.l.b16 %v1254
    %v1617 = vunpack.c.h.b16 %v1254
    %v1618 = vunpack.c.l.b16 %v1255
    %v1619 = vunpack.c.h.b16 %v1255
    %v1620 = vunpack.c.l.b16 %v1256
    %v1621 = vunpack.c.h.b16 %v1256
    %v1622 = vunpack.c.l.b16 %v1257
    %v1623 = vunpack.c.h.b16 %v1257
    %v1624 = vunpack.c.l.b16 %v1258
    %v1625 = vunpack.c.h.b16 %v1258
    %v1626 = vunpack.c.l.b16 %v1259
    %v1627 = vunpack.c.h.b16 %v1259
    %v1628 = vunpack.c.l.b16 %v1260
    %v1629 = vunpack.c.h.b16 %v1260
    %v1630 = vunpack.c.l.b16 %v1261
    %v1631 = vunpack.c.h.b16 %v1261
    %v1632 = vunpack.c.l.b16 %v1262
    %v1633 = vunpack.c.h.b16 %v1262
    %v1634 = vunpack.c.l.b16 %v1263
    %v1635 = vunpack.c.h.b16 %v1263
    %v1636 = vunpack.c.l.b16 %v1264
    %v1637 = vunpack.c.h.b16 %v1264
    %v1638 = vunpack.c.l.b16 %v1265
    %v1639 = vunpack.c.h.b16 %v1265
    %v1640 = vunpack.c.l.b16 %v1266
    %v1641 = vunpack.c.h.b16 %v1266
    %v1642 = vunpack.c.l.b16 %v1267
    %v1643 = vunpack.c.h.b16 %v1267
    %v1644 = vunpack.c.l.b16 %v1268
    %v1645 = vunpack.c.h.b16 %v1268
    %v1646 = vunpack.c.l.b16 %v1269
    %v1647 = vunpack.c.h.b16 %v1269
    %v1648 = vunpack.c.l.b16 %v1270
    %v1649 = vunpack.c.h.b16 %v1270
    %v1650 = vunpack.c.l.b16 %v1271
    %v1651 = vunpack.c.h.b16 %v1271
    %v1652 = vunpack.c.l.b16 %v1272
    %v1653 = vunpack.c.h.b16 %v1272
    %v1654 = vunpack.c.l.b16 %v1273
    %v1655 = vunpack.c.h.b16 %v1273
    %v1656 = vunpack.c.l.b16 %v1274
    %v1657 = vunpack.c.h.b16 %v1274
    %v1658 = vunpack.c.l.b16 %v1275
    %v1659 = vunpack.c.h.b16 %v1275
    %v1660 = vunpack.c.l.b16 %v1276
    %v1661 = vunpack.c.h.b16 %v1276
    %v1662 = vunpack.c.l.b16 %v1277
    %v1663 = vunpack.c.h.b16 %v1277
    %v1664 = vunpack.c.l.b16 %v1278
    %v1665 = vunpack.c.h.b16 %v1278
    %v1666 = vunpack.c.l.b16 %v1279
    %v1667 = vunpack.c.h.b16 %v1279
    %v1668 = vunpack.c.l.b16 %v1280
    %v1669 = vunpack.c.h.b16 %v1280
    %v1670 = vunpack.c.l.b16 %v1281
    %v1671 = vunpack.c.h.b16 %v1281
    %v1672 = vunpack.c.l.b16 %v1282
    %v1673 = vunpack.c.h.b16 %v1282
    %v1674 = vunpack.c.l.b16 %v1283
    %v1675 = vunpack.c.h.b16 %v1283
    %v1676 = vunpack.c.l.b16 %v1284
    %v1677 = vunpack.c.h.b16 %v1284
    %v1678 = vunpack.c.l.b16 %v1285
    %v1679 = vunpack.c.h.b16 %v1285
    %v1680 = vunpack.c.l.b16 %v1286
    %v1681 = vunpack.c.h.b16 %v1286
    %v1682 = vunpack.c.l.b16 %v1287
    %v1683 = vunpack.c.h.b16 %v1287
    %v1684 = vunpack.c.l.b16 %v1288
    %v1685 = vunpack.c.h.b16 %v1288
    %v1686 = vunpack.c.l.b16 %v1289
    %v1687 = vunpack.c.h.b16 %v1289
    %v1688 = vunpack.c.l.b16 %v1290
    %v1689 = vunpack.c.h.b16 %v1290
    %v1690 = vunpack.c.l.b16 %v1291
    %v1691 = vunpack.c.h.b16 %v1291
    %v1692 = vunpack.c.l.b16 %v1292
    %v1693 = vunpack.c.h.b16 %v1292
    %v1694 = vunpack.c.l.b16 %v1293
    %v1695 = vunpack.c.h.b16 %v1293
    %v1696 = vunpack.c.l.b16 %v1294
    %v1697 = vunpack.c.h.b16 %v1294
    %v1698 = vunpack.c.l.b16 %v1295
    %v1699 = vunpack.c.h.b16 %v1295
    %v1700 = vunpack.c.l.b16 %v1296
    %v1701 = vunpack.c.h.b16 %v1296
    %v1702 = vunpack.c.l.b16 %v1297
    %v1703 = vunpack.c.h.b16 %v1297
    %v1704 = vpack.c.b16 %v1452, %v1448
    %v1705 = vpack.c.b16 %v1453, %v1449
    %v1706 = vpack.c.b16 %v1454, %v1450
    %v1707 = vpack.c.b16 %v1455, %v1451
    %v1708 = vpack.c.b16 %v1460, %v1456
    %v1709 = vpack.c.b16 %v1461, %v1457
    %v1710 = vpack.c.b16 %v1462, %v1458
    %v1711 = vpack.c.b16 %v1463, %v1459
    %v1712 = vpack.c.b16 %v1468, %v1464
    %v1713 = vpack.c.b16 %v1469, %v1465
    %v1714 = vpack.c.b16 %v1470, %v1466
    %v1715 = vpack.c.b16 %v1471, %v1467
    %v1716 = vpack.c.b16 %v1476, %v1472
    %v1717 = vpack.c.b16 %v1477, %v1473
    %v1718 = vpack.c.b16 %v1478, %v1474
    %v1719 = vpack.c.b16 %v1479, %v1475
    %v1720 = vpack.c.b16 %v1484, %v1480
    %v1721 = vpack.c.b16 %v1485, %v1481
    %v1722 = vpack.c.b16 %v1486, %v1482
    %v1723 = vpack.c.b16 %v1487, %v1483
    %v1724 = vpack.c.b16 %v1492, %v1488
    %v1725 = vpack.c.b16 %v1493, %v1489
    %v1726 = vpack.c.b16 %v1494, %v1490
    %v1727 = vpack.c.b16 %v1495, %v1491
    %v1728 = vpack.c.b16 %v1500, %v1496
    %v1729 = vpack.c.b16 %v1501, %v1497
    %v1730 = vpack.c.b16 %v1502, %v1498
    %v1731 = vpack.c.b16 %v1503, %v1499
    %v1732 = vpack.c.b16 %v1508, %v1504
    %v1733 = vpack.c.b16 %v1509, %v1505
    %v1734 = vpack.c.b16 %v1510, %v1506
    %v1735 = vpack.c.b16 %v1511, %v1507
    %v1736 = vpack.c.b16 %v1516, %v1512
    %v1737 = vpack.c.b16 %v1517, %v1513
    %v1738 = vpack.c.b16 %v1518, %v1514
    %v1739 = vpack.c.b16 %v1519, %v1515
    %v1740 = vpack.c.b16 %v1524, %v1520
    %v1741 = vpack.c.b16 %v1525, %v1521
    %v1742 = vpack.c.b16 %v1526, %v1522
    %v1743 = vpack.c.b16 %v1527, %v1523
    %v1744 = vpack.c.b16 %v1532, %v1528
    %v1745 = vpack.c.b16 %v1533, %v1529
    %v1746 = vpack.c.b16 %v1534, %v1530
    %v1747 = vpack.c.b16 %v1535, %v1531
    %v1748 = vpack.c.b16 %v1540, %v1536
    %v1749 = vpack.c.b16 %v1541, %v1537
    %v1750 = vpack.c.b16 %v1542, %v1538
    %v1751 = vpack.c.b16 %v1543, %v1539
    %v1752 = vpack.c.b16 %v1548, %v1544
    %v1753 = vpack.c.b16 %v1549, %v1545
    %v1754 = vpack.c.b16 %v1550, %v1546
    %v1755 = vpack.c.b16 %v1551, %v1547
    %v1756 = vpack.c.b16 %v1556, %v1552
    %v1757 = vpack.c.b16 %v1557, %v1553
    %v1758 = vpack.c.b16 %v1558, %v1554
    %v1759 = vpack.c.b16 %v1559, %v1555
    %v1760 = vpack.c.b16 %v1564, %v1560
    %v1761 = vpack.c.b16 %v1565, %v1561
    %v1762 = vpack.c.b16 %v1566, %v1562
    %v1763 = vpack.c.b16 %v1567, %v1563
    %v1764 = vpack.c.b16 %v1572, %v1568
    %v1765 = vpack.c.b16 %v1573, %v1569
    %v1766 = vpack.c.b16 %v1574, %v1570
    %v1767 = vpack.c.b16 %v1575, %v1571
    %v1768 = vpack.c.b16 %v1580, %v1576
    %v1769 = vpack.c.b16 %v1581, %v1577
    %v1770 = vpack.c.b16 %v1582, %v1578
    %v1771 = vpack.c.b16 %v1583, %v1579
    %v1772 = vpack.c.b16 %v1588, %v1584
    %v1773 = vpack.c.b16 %v1589, %v1585
    %v1774 = vpack.c.b16 %v1590, %v1586
    %v1775 = vpack.c.b16 %v1591, %v1587
    %v1776 = vpack.c.b16 %v1596, %v1592
    %v1777 = vpack.c.b16 %v1597, %v1593
    %v1778 = vpack.c.b16 %v1598, %v1594
    %v1779 = vpack.c.b16 %v1599, %v1595
    %v1780 = vpack.c.b16 %v1604, %v1600
    %v1781 = vpack.c.b16 %v1605, %v1601
    %v1782 = vpack.c.b16 %v1606, %v1602
    %v1783 = vpack.c.b16 %v1607, %v1603
    %v1784 = vpack.c.b16 %v1612, %v1608
    %v1785 = vpack.c.b16 %v1613, %v1609
    %v1786 = vpack.c.b16 %v1614, %v1610
    %v1787 = vpack.c.b16 %v1615, %v1611
    %v1788 = vpack.c.b16 %v1620, %v1616
    %v1789 = vpack.c.b16 %v1621, %v1617
    %v1790 = vpack.c.b16 %v1622, %v1618
    %v1791 = vpack.c.b16 %v1623, %v1619
    %v1792 = vpack.c.b16 %v1628, %v1624
    %v1793 = vpack.c.b16 %v1629, %v1625
    %v1794 = vpack.c.b16 %v1630, %v1626
    %v1795 = vpack.c.b16 %v1631, %v1627
    %v1796 = vpack.c.b16 %v1636, %v1632
    %v1797 = vpack.c.b16 %v1637, %v1633
    %v1798 = vpack.c.b16 %v1638, %v1634
    %v1799 = vpack.c.b16 %v1639, %v1635
    %v1800 = vpack.c.b16 %v1644, %v1640
    %v1801 = vpack.c.b16 %v1645, %v1641
    %v1802 = vpack.c.b16 %v1646, %v1642
    %v1803 = vpack.c.b16 %v1647, %v1643
    %v1804 = vpack.c.b16 %v1652, %v1648
    %v1805 = vpack.c.b16 %v1653, %v1649
    %v1806 = vpack.c.b16 %v1654, %v1650
    %v1807 = vpack.c.b16 %v1655, %v1651
    %v1808 = vpack.c.b16 %v1660, %v1656
    %v1809 = vpack.c.b16 %v1661, %v1657
    %v1810 = vpack.c.b16 %v1662, %v1658
    %v1811 = vpack.c.b16 %v1663, %v1659
    %v1812 = vpack.c.b16 %v1668, %v1664
    %v1813 = vpack.c.b16 %v1669, %v1665
    %v1814 = vpack.c.b16 %v1670, %v1666
    %v1815 = vpack.c.b16 %v1671, %v1667
    %v1816 = vpack.c.b16 %v1676, %v1672
    %v1817 = vpack.c.b16 %v1677, %v1673
    %v1818 = vpack.c.b16 %v1678, %v1674
    %v1819 = vpack.c.b16 %v1679, %v1675
    %v1820 = vpack.c.b16 %v1684, %v1680
    %v1821 = vpack.c.b16 %v1685, %v1681
    %v1822 = vpack.c.b16 %v1686, %v1682
    %v1823 = vpack.c.b16 %v1687, %v1683
    %v1824 = vpack.c.b16 %v1692, %v1688
    %v1825 = vpack.c.b16 %v1693, %v1689
    %v1826 = vpack.c.b16 %v1694, %v1690
    %v1827 = vpack.c.b16 %v1695, %v1691
    %v1828 = vpack.c.b16 %v1700, %v1696
    %v1829 = vpack.c.b16 %v1701, %v1697
    %v1830 = vpack.c.b16 %v1702, %v1698
    %v1831 = vpack.c.b16 %v1703, %v1699
    %1960 = vmatprep.subr.bf16.mxu0 %v1705
    %1961 = vmatpush1.bf16.msra.mxu0 %v1704
    %1962 = vmatprep.subr.bf16.mxu0 %v1709
    %1963 = vmatpush1.bf16.msra.mxu0 %v1708
    %1964 = vmatprep.subr.bf16.mxu0 %v1713
    %1965 = vmatpush1.bf16.msra.mxu0 %v1712
    %1966 = vmatprep.subr.bf16.mxu0 %v1717
    %1967 = vmatpush1.bf16.msra.mxu0 %v1716
    %1968 = vmatprep.subr.bf16.mxu0 %v1721
    %1969 = vmatpush1.bf16.msra.mxu0 %v1720
    %1970 = vmatprep.subr.bf16.mxu0 %v1725
    %1971 = vmatpush1.bf16.msra.mxu0 %v1724
    %1972 = vmatprep.subr.bf16.mxu0 %v1729
    %1973 = vmatpush1.bf16.msra.mxu0 %v1728
    %1974 = vmatprep.subr.bf16.mxu0 %v1733
    %1975 = vmatpush1.bf16.msra.mxu0 %v1732
    %1976 = vmatprep.subr.bf16.mxu0 %v1737
    %1977 = vmatpush1.bf16.msra.mxu0 %v1736
    %1978 = vmatprep.subr.bf16.mxu0 %v1741
    %1979 = vmatpush1.bf16.msra.mxu0 %v1740
    %1980 = vmatprep.subr.bf16.mxu0 %v1745
    %1981 = vmatpush1.bf16.msra.mxu0 %v1744
    %1982 = vmatprep.subr.bf16.mxu0 %v1749
    %1983 = vmatpush1.bf16.msra.mxu0 %v1748
    %1984 = vmatprep.subr.bf16.mxu0 %v1753
    %1985 = vmatpush1.bf16.msra.mxu0 %v1752
    %1986 = vmatprep.subr.bf16.mxu0 %v1757
    %1987 = vmatpush1.bf16.msra.mxu0 %v1756
    %1988 = vmatprep.subr.bf16.mxu0 %v1761
    %1989 = vmatpush1.bf16.msra.mxu0 %v1760
    %1990 = vmatprep.subr.bf16.mxu0 %v1765
    %1991 = vmatpush1.bf16.msra.mxu0 %v1764
    %1992 = vmatprep.mubr.bf16.mxu0 %v1167
    %1993 = vmatmul.mubr.bf16.gmra.mrb[0].mxu0 %v1166
    %v1994 = vpop.f32.mrb[0].mxu0
    %v1995 = vadd.f32 %v1303, %v1994
    %v1996 = vpop.f32.mrb[0].mxu0
    %v1997 = vadd.f32 %v1307, %v1996
    %v1998 = vpop.f32.mrb[0].mxu0
    %v1999 = vpop.f32.mrb[0].mxu0
    %2000 = vdwg.mxu0
    %2001 = vmatprep.subr.bf16.mxu0 %v1769
    %2002 = vmatpush1.bf16.msra.mxu0 %v1768
    %2003 = vmatprep.subr.bf16.mxu0 %v1773
    %2004 = vmatpush1.bf16.msra.mxu0 %v1772
    %2005 = vmatprep.subr.bf16.mxu0 %v1777
    %2006 = vmatpush1.bf16.msra.mxu0 %v1776
    %2007 = vmatprep.subr.bf16.mxu0 %v1781
    %2008 = vmatpush1.bf16.msra.mxu0 %v1780
    %2009 = vmatprep.subr.bf16.mxu0 %v1785
    %2010 = vmatpush1.bf16.msra.mxu0 %v1784
    %2011 = vmatprep.subr.bf16.mxu0 %v1789
    %2012 = vmatpush1.bf16.msra.mxu0 %v1788
    %2013 = vmatprep.subr.bf16.mxu0 %v1793
    %2014 = vmatpush1.bf16.msra.mxu0 %v1792
    %2015 = vmatprep.subr.bf16.mxu0 %v1797
    %2016 = vmatpush1.bf16.msra.mxu0 %v1796
    %2017 = vmatprep.subr.bf16.mxu0 %v1801
    %2018 = vmatpush1.bf16.msra.mxu0 %v1800
    %2019 = vmatprep.subr.bf16.mxu0 %v1805
    %2020 = vmatpush1.bf16.msra.mxu0 %v1804
    %2021 = vmatprep.subr.bf16.mxu0 %v1809
    %2022 = vmatpush1.bf16.msra.mxu0 %v1808
    %2023 = vmatprep.subr.bf16.mxu0 %v1813
    %2024 = vmatpush1.bf16.msra.mxu0 %v1812
    %2025 = vmatprep.subr.bf16.mxu0 %v1817
    %2026 = vmatpush1.bf16.msra.mxu0 %v1816
    %2027 = vmatprep.subr.bf16.mxu0 %v1821
    %2028 = vmatpush1.bf16.msra.mxu0 %v1820
    %2029 = vmatprep.subr.bf16.mxu0 %v1825
    %2030 = vmatpush1.bf16.msra.mxu0 %v1824
    %2031 = vmatprep.subr.bf16.mxu0 %v1829
    %2032 = vmatpush1.bf16.msra.mxu0 %v1828
    %2033 = vmatprep.mubr.bf16.mxu0 %v1169
    %2034 = vmatmul.mubr.bf16.gmra.mrb[0].mxu0 %v1168
    %v2035 = vpop.f32.mrb[0].mxu0
    %v2036 = vadd.f32 %v1995, %v2035
    %v2037 = vpop.f32.mrb[0].mxu0
    %v2038 = vadd.f32 %v1997, %v2037
    %v2039 = vpop.f32.mrb[0].mxu0
    %v2040 = vpop.f32.mrb[0].mxu0
    %2041 = vdwg.mxu0
    %2042 = vmatprep.subr.bf16.mxu0 %v1707
    %2043 = vmatpush1.bf16.msra.mxu0 %v1706
    %2044 = vmatprep.subr.bf16.mxu0 %v1711
    %2045 = vmatpush1.bf16.msra.mxu0 %v1710
    %2046 = vmatprep.subr.bf16.mxu0 %v1715
    %2047 = vmatpush1.bf16.msra.mxu0 %v1714
    %2048 = vmatprep.subr.bf16.mxu0 %v1719
    %2049 = vmatpush1.bf16.msra.mxu0 %v1718
    %2050 = vmatprep.subr.bf16.mxu0 %v1723
    %2051 = vmatpush1.bf16.msra.mxu0 %v1722
    %2052 = vmatprep.subr.bf16.mxu0 %v1727
    %2053 = vmatpush1.bf16.msra.mxu0 %v1726
    %2054 = vmatprep.subr.bf16.mxu0 %v1731
    %2055 = vmatpush1.bf16.msra.mxu0 %v1730
    %2056 = vmatprep.subr.bf16.mxu0 %v1735
    %2057 = vmatpush1.bf16.msra.mxu0 %v1734
    %2058 = vmatprep.subr.bf16.mxu0 %v1739
    %2059 = vmatpush1.bf16.msra.mxu0 %v1738
    %2060 = vmatprep.subr.bf16.mxu0 %v1743
    %2061 = vmatpush1.bf16.msra.mxu0 %v1742
    %2062 = vmatprep.subr.bf16.mxu0 %v1747
    %2063 = vmatpush1.bf16.msra.mxu0 %v1746
    %2064 = vmatprep.subr.bf16.mxu0 %v1751
    %2065 = vmatpush1.bf16.msra.mxu0 %v1750
    %2066 = vmatprep.subr.bf16.mxu0 %v1755
    %2067 = vmatpush1.bf16.msra.mxu0 %v1754
    %2068 = vmatprep.subr.bf16.mxu0 %v1759
    %2069 = vmatpush1.bf16.msra.mxu0 %v1758
    %2070 = vmatprep.subr.bf16.mxu0 %v1763
    %2071 = vmatpush1.bf16.msra.mxu0 %v1762
    %2072 = vmatprep.subr.bf16.mxu0 %v1767
    %2073 = vmatpush1.bf16.msra.mxu0 %v1766
    %2074 = vmatprep.mubr.bf16.mxu0 %v1167
    %2075 = vmatmul.mubr.bf16.gmra.mrb[0].mxu0 %v1166
    %v2076 = vpop.f32.mrb[0].mxu0
    %v2077 = vadd.f32 %v1311, %v2076
    %v2078 = vpop.f32.mrb[0].mxu0
    %v2079 = vadd.f32 %v1315, %v2078
    %v2080 = vpop.f32.mrb[0].mxu0
    %v2081 = vpop.f32.mrb[0].mxu0
    %2082 = vdwg.mxu0
    %2083 = vmatprep.subr.bf16.mxu0 %v1771
    %2084 = vmatpush1.bf16.msra.mxu0 %v1770
    %2085 = vmatprep.subr.bf16.mxu0 %v1775
    %2086 = vmatpush1.bf16.msra.mxu0 %v1774
    %2087 = vmatprep.subr.bf16.mxu0 %v1779
    %2088 = vmatpush1.bf16.msra.mxu0 %v1778
    %2089 = vmatprep.subr.bf16.mxu0 %v1783
    %2090 = vmatpush1.bf16.msra.mxu0 %v1782
    %2091 = vmatprep.subr.bf16.mxu0 %v1787
    %2092 = vmatpush1.bf16.msra.mxu0 %v1786
    %2093 = vmatprep.subr.bf16.mxu0 %v1791
    %2094 = vmatpush1.bf16.msra.mxu0 %v1790
    %2095 = vmatprep.subr.bf16.mxu0 %v1795
    %2096 = vmatpush1.bf16.msra.mxu0 %v1794
    %2097 = vmatprep.subr.bf16.mxu0 %v1799
    %2098 = vmatpush1.bf16.msra.mxu0 %v1798
    %2099 = vmatprep.subr.bf16.mxu0 %v1803
    %2100 = vmatpush1.bf16.msra.mxu0 %v1802
    %2101 = vmatprep.subr.bf16.mxu0 %v1807
    %2102 = vmatpush1.bf16.msra.mxu0 %v1806
    %2103 = vmatprep.subr.bf16.mxu0 %v1811
    %2104 = vmatpush1.bf16.msra.mxu0 %v1810
    %2105 = vmatprep.subr.bf16.mxu0 %v1815
    %2106 = vmatpush1.bf16.msra.mxu0 %v1814
    %2107 = vmatprep.subr.bf16.mxu0 %v1819
    %2108 = vmatpush1.bf16.msra.mxu0 %v1818
    %2109 = vmatprep.subr.bf16.mxu0 %v1823
    %2110 = vmatpush1.bf16.msra.mxu0 %v1822
    %2111 = vmatprep.subr.bf16.mxu0 %v1827
    %2112 = vmatpush1.bf16.msra.mxu0 %v1826
    %2113 = vmatprep.subr.bf16.mxu0 %v1831
    %2114 = vmatpush1.bf16.msra.mxu0 %v1830
    %2115 = vmatprep.mubr.bf16.mxu0 %v1169
    %2116 = vmatmul.mubr.bf16.gmra.mrb[0].mxu0 %v1168
    %v2117 = vpop.f32.mrb[0].mxu0
    %v2118 = vadd.f32 %v2077, %v2117
    %v2119 = vpop.f32.mrb[0].mxu0
    %v2120 = vadd.f32 %v2079, %v2119
    %v2121 = vpop.f32.mrb[0].mxu0
    %v2122 = vpop.f32.mrb[0].mxu0
    %2123 = vdwg.mxu0
    %v2124 = vmax.f32 %v2036, 0.0
    %v2125 = vmax.f32 %v2038, 0.0
    %v2126 = vmax.f32 %v2118, 0.0
    %v2127 = vmax.f32 %v2120, 0.0
    %v2128 = vpack.c.bf16 %v2124, %v2124
    %v2129 = vpack.c.bf16 %v2125, %v2125
    %v2130 = vpack.c.bf16 %v2126, %v2126
    %v2131 = vpack.c.bf16 %v2127, %v2127
    %v2132 = vld [vmem:[%s7] sm:$0xf]
    %v2133 = vld [vmem:[%s7 + $0x4] sm:$0xf]
    %v2134 = vld [vmem:[%s7 + $0x8] sm:$0xf]
    %v2135 = vld [vmem:[%s7 + $0xc] sm:$0xf]
    %v2136 = vld [vmem:[%s7 + $0x10] sm:$0xf]
    %v2137 = vld [vmem:[%s7 + $0x14] sm:$0xf]
    %v2138 = vld [vmem:[%s7 + $0x18] sm:$0xf]
    %v2139 = vld [vmem:[%s7 + $0x1c] sm:$0xf]
    %v2140 = vld [vmem:[%s7 + $0x20] sm:$0xf]
    %v2141 = vld [vmem:[%s7 + $0x24] sm:$0xf]
    %v2142 = vld [vmem:[%s7 + $0x28] sm:$0xf]
    %v2143 = vld [vmem:[%s7 + $0x2c] sm:$0xf]
    %v2144 = vld [vmem:[%s7 + $0x30] sm:$0xf]
    %v2145 = vld [vmem:[%s7 + $0x34] sm:$0xf]
    %v2146 = vld [vmem:[%s7 + $0x38] sm:$0xf]
    %v2147 = vld [vmem:[%s7 + $0x3c] sm:$0xf]
    %v2148 = vld [vmem:[%s7 + $0x40] sm:$0xf]
    %v2149 = vld [vmem:[%s7 + $0x44] sm:$0xf]
    %v2150 = vld [vmem:[%s7 + $0x48] sm:$0xf]
    %v2151 = vld [vmem:[%s7 + $0x4c] sm:$0xf]
    %v2152 = vld [vmem:[%s7 + $0x50] sm:$0xf]
    %v2153 = vld [vmem:[%s7 + $0x54] sm:$0xf]
    %v2154 = vld [vmem:[%s7 + $0x58] sm:$0xf]
    %v2155 = vld [vmem:[%s7 + $0x5c] sm:$0xf]
    %v2156 = vld [vmem:[%s7 + $0x60] sm:$0xf]
    %v2157 = vld [vmem:[%s7 + $0x64] sm:$0xf]
    %v2158 = vld [vmem:[%s7 + $0x68] sm:$0xf]
    %v2159 = vld [vmem:[%s7 + $0x6c] sm:$0xf]
    %v2160 = vld [vmem:[%s7 + $0x70] sm:$0xf]
    %v2161 = vld [vmem:[%s7 + $0x74] sm:$0xf]
    %v2162 = vld [vmem:[%s7 + $0x78] sm:$0xf]
    %v2163 = vld [vmem:[%s7 + $0x7c] sm:$0xf]
    %v2164 = vld [vmem:[%s7 + $0x80] sm:$0xf]
    %v2165 = vld [vmem:[%s7 + $0x84] sm:$0xf]
    %v2166 = vld [vmem:[%s7 + $0x88] sm:$0xf]
    %v2167 = vld [vmem:[%s7 + $0x8c] sm:$0xf]
    %v2168 = vld [vmem:[%s7 + $0x90] sm:$0xf]
    %v2169 = vld [vmem:[%s7 + $0x94] sm:$0xf]
    %v2170 = vld [vmem:[%s7 + $0x98] sm:$0xf]
    %v2171 = vld [vmem:[%s7 + $0x9c] sm:$0xf]
    %v2172 = vld [vmem:[%s7 + $0xa0] sm:$0xf]
    %v2173 = vld [vmem:[%s7 + $0xa4] sm:$0xf]
    %v2174 = vld [vmem:[%s7 + $0xa8] sm:$0xf]
    %v2175 = vld [vmem:[%s7 + $0xac] sm:$0xf]
    %v2176 = vld [vmem:[%s7 + $0xb0] sm:$0xf]
    %v2177 = vld [vmem:[%s7 + $0xb4] sm:$0xf]
    %v2178 = vld [vmem:[%s7 + $0xb8] sm:$0xf]
    %v2179 = vld [vmem:[%s7 + $0xbc] sm:$0xf]
    %v2180 = vld [vmem:[%s7 + $0xc0] sm:$0xf]
    %v2181 = vld [vmem:[%s7 + $0xc4] sm:$0xf]
    %v2182 = vld [vmem:[%s7 + $0xc8] sm:$0xf]
    %v2183 = vld [vmem:[%s7 + $0xcc] sm:$0xf]
    %v2184 = vld [vmem:[%s7 + $0xd0] sm:$0xf]
    %v2185 = vld [vmem:[%s7 + $0xd4] sm:$0xf]
    %v2186 = vld [vmem:[%s7 + $0xd8] sm:$0xf]
    %v2187 = vld [vmem:[%s7 + $0xdc] sm:$0xf]
    %v2188 = vld [vmem:[%s7 + $0xe0] sm:$0xf]
    %v2189 = vld [vmem:[%s7 + $0xe4] sm:$0xf]
    %v2190 = vld [vmem:[%s7 + $0xe8] sm:$0xf]
    %v2191 = vld [vmem:[%s7 + $0xec] sm:$0xf]
    %v2192 = vld [vmem:[%s7 + $0xf0] sm:$0xf]
    %v2193 = vld [vmem:[%s7 + $0xf4] sm:$0xf]
    %v2194 = vld [vmem:[%s7 + $0xf8] sm:$0xf]
    %v2195 = vld [vmem:[%s7 + $0xfc] sm:$0xf]
    %v2196 = vld [vmem:[%s8] sm:$0x1]
    %v2198 = vlaneseq
    %v2199 = vshrl.u32 %v2198, 7
    %v2200 = vsub.s32 0, %v2199
    %v2201 = vrot.slane %v2196, %v2200
    %v2267 = vunpack.c.l.b16 %v2132
    %v2268 = vunpack.c.l.b16 %v2133
    %v2269 = vunpack.c.l.b16 %v2134
    %v2270 = vunpack.c.l.b16 %v2135
    %v2271 = vunpack.c.l.b16 %v2136
    %v2272 = vunpack.c.l.b16 %v2137
    %v2273 = vunpack.c.l.b16 %v2138
    %v2274 = vunpack.c.l.b16 %v2139
    %v2275 = vunpack.c.l.b16 %v2140
    %v2276 = vunpack.c.l.b16 %v2141
    %v2277 = vunpack.c.l.b16 %v2142
    %v2278 = vunpack.c.l.b16 %v2143
    %v2279 = vunpack.c.l.b16 %v2144
    %v2280 = vunpack.c.l.b16 %v2145
    %v2281 = vunpack.c.l.b16 %v2146
    %v2282 = vunpack.c.l.b16 %v2147
    %v2283 = vunpack.c.l.b16 %v2148
    %v2284 = vunpack.c.l.b16 %v2149
    %v2285 = vunpack.c.l.b16 %v2150
    %v2286 = vunpack.c.l.b16 %v2151
    %v2287 = vunpack.c.l.b16 %v2152
    %v2288 = vunpack.c.l.b16 %v2153
    %v2289 = vunpack.c.l.b16 %v2154
    %v2290 = vunpack.c.l.b16 %v2155
    %v2291 = vunpack.c.l.b16 %v2156
    %v2292 = vunpack.c.l.b16 %v2157
    %v2293 = vunpack.c.l.b16 %v2158
    %v2294 = vunpack.c.l.b16 %v2159
    %v2295 = vunpack.c.l.b16 %v2160
    %v2296 = vunpack.c.l.b16 %v2161
    %v2297 = vunpack.c.l.b16 %v2162
    %v2298 = vunpack.c.l.b16 %v2163
    %v2299 = vunpack.c.l.b16 %v2164
    %v2300 = vunpack.c.l.b16 %v2165
    %v2301 = vunpack.c.l.b16 %v2166
    %v2302 = vunpack.c.l.b16 %v2167
    %v2303 = vunpack.c.l.b16 %v2168
    %v2304 = vunpack.c.l.b16 %v2169
    %v2305 = vunpack.c.l.b16 %v2170
    %v2306 = vunpack.c.l.b16 %v2171
    %v2307 = vunpack.c.l.b16 %v2172
    %v2308 = vunpack.c.l.b16 %v2173
    %v2309 = vunpack.c.l.b16 %v2174
    %v2310 = vunpack.c.l.b16 %v2175
    %v2311 = vunpack.c.l.b16 %v2176
    %v2312 = vunpack.c.l.b16 %v2177
    %v2313 = vunpack.c.l.b16 %v2178
    %v2314 = vunpack.c.l.b16 %v2179
    %v2315 = vunpack.c.l.b16 %v2180
    %v2316 = vunpack.c.l.b16 %v2181
    %v2317 = vunpack.c.l.b16 %v2182
    %v2318 = vunpack.c.l.b16 %v2183
    %v2319 = vunpack.c.l.b16 %v2184
    %v2320 = vunpack.c.l.b16 %v2185
    %v2321 = vunpack.c.l.b16 %v2186
    %v2322 = vunpack.c.l.b16 %v2187
    %v2323 = vunpack.c.l.b16 %v2188
    %v2324 = vunpack.c.l.b16 %v2189
    %v2325 = vunpack.c.l.b16 %v2190
    %v2326 = vunpack.c.l.b16 %v2191
    %v2327 = vunpack.c.l.b16 %v2192
    %v2328 = vunpack.c.l.b16 %v2193
    %v2329 = vunpack.c.l.b16 %v2194
    %v2330 = vunpack.c.l.b16 %v2195
    %v2331 = vpack.c.b16 %v2268, %v2267
    %v2332 = vpack.c.b16 %v2270, %v2269
    %v2333 = vpack.c.b16 %v2272, %v2271
    %v2334 = vpack.c.b16 %v2274, %v2273
    %v2335 = vpack.c.b16 %v2276, %v2275
    %v2336 = vpack.c.b16 %v2278, %v2277
    %v2337 = vpack.c.b16 %v2280, %v2279
    %v2338 = vpack.c.b16 %v2282, %v2281
    %v2339 = vpack.c.b16 %v2284, %v2283
    %v2340 = vpack.c.b16 %v2286, %v2285
    %v2341 = vpack.c.b16 %v2288, %v2287
    %v2342 = vpack.c.b16 %v2290, %v2289
    %v2343 = vpack.c.b16 %v2292, %v2291
    %v2344 = vpack.c.b16 %v2294, %v2293
    %v2345 = vpack.c.b16 %v2296, %v2295
    %v2346 = vpack.c.b16 %v2298, %v2297
    %v2347 = vpack.c.b16 %v2300, %v2299
    %v2348 = vpack.c.b16 %v2302, %v2301
    %v2349 = vpack.c.b16 %v2304, %v2303
    %v2350 = vpack.c.b16 %v2306, %v2305
    %v2351 = vpack.c.b16 %v2308, %v2307
    %v2352 = vpack.c.b16 %v2310, %v2309
    %v2353 = vpack.c.b16 %v2312, %v2311
    %v2354 = vpack.c.b16 %v2314, %v2313
    %v2355 = vpack.c.b16 %v2316, %v2315
    %v2356 = vpack.c.b16 %v2318, %v2317
    %v2357 = vpack.c.b16 %v2320, %v2319
    %v2358 = vpack.c.b16 %v2322, %v2321
    %v2359 = vpack.c.b16 %v2324, %v2323
    %v2360 = vpack.c.b16 %v2326, %v2325
    %v2361 = vpack.c.b16 %v2328, %v2327
    %v2362 = vpack.c.b16 %v2330, %v2329
    %2395 = vmatprep.subr.bf16.mxu0 0
    %2396 = vmatpush1.bf16.msra.mxu0 %v2331
    %2397 = vmatprep.subr.bf16.mxu0 0
    %2398 = vmatpush1.bf16.msra.mxu0 %v2332
    %2399 = vmatprep.subr.bf16.mxu0 0
    %2400 = vmatpush1.bf16.msra.mxu0 %v2333
    %2401 = vmatprep.subr.bf16.mxu0 0
    %2402 = vmatpush1.bf16.msra.mxu0 %v2334
    %2403 = vmatprep.subr.bf16.mxu0 0
    %2404 = vmatpush1.bf16.msra.mxu0 %v2335
    %2405 = vmatprep.subr.bf16.mxu0 0
    %2406 = vmatpush1.bf16.msra.mxu0 %v2336
    %2407 = vmatprep.subr.bf16.mxu0 0
    %2408 = vmatpush1.bf16.msra.mxu0 %v2337
    %2409 = vmatprep.subr.bf16.mxu0 0
    %2410 = vmatpush1.bf16.msra.mxu0 %v2338
    %2411 = vmatprep.subr.bf16.mxu0 0
    %2412 = vmatpush1.bf16.msra.mxu0 %v2339
    %2413 = vmatprep.subr.bf16.mxu0 0
    %2414 = vmatpush1.bf16.msra.mxu0 %v2340
    %2415 = vmatprep.subr.bf16.mxu0 0
    %2416 = vmatpush1.bf16.msra.mxu0 %v2341
    %2417 = vmatprep.subr.bf16.mxu0 0
    %2418 = vmatpush1.bf16.msra.mxu0 %v2342
    %2419 = vmatprep.subr.bf16.mxu0 0
    %2420 = vmatpush1.bf16.msra.mxu0 %v2343
    %2421 = vmatprep.subr.bf16.mxu0 0
    %2422 = vmatpush1.bf16.msra.mxu0 %v2344
    %2423 = vmatprep.subr.bf16.mxu0 0
    %2424 = vmatpush1.bf16.msra.mxu0 %v2345
    %2425 = vmatprep.subr.bf16.mxu0 0
    %2426 = vmatpush1.bf16.msra.mxu0 %v2346
    %2427 = vmatprep.mubr.bf16.mxu0 %v2129
    %2428 = vmatmul.mubr.bf16.gmra.mrb[0].mxu0 %v2128
    %v2429 = vpop.f32.mrb[0].mxu0
    %v2430 = vadd.f32 %v2201, %v2429
    %v2431 = vpop.f32.mrb[0].mxu0
    %v2432 = vpop.f32.mrb[0].mxu0
    %v2433 = vpop.f32.mrb[0].mxu0
    %2434 = vdwg.mxu0
    %2435 = vmatprep.subr.bf16.mxu0 0
    %2436 = vmatpush1.bf16.msra.mxu0 %v2347
    %2437 = vmatprep.subr.bf16.mxu0 0
    %2438 = vmatpush1.bf16.msra.mxu0 %v2348
    %2439 = vmatprep.subr.bf16.mxu0 0
    %2440 = vmatpush1.bf16.msra.mxu0 %v2349
    %2441 = vmatprep.subr.bf16.mxu0 0
    %2442 = vmatpush1.bf16.msra.mxu0 %v2350
    %2443 = vmatprep.subr.bf16.mxu0 0
    %2444 = vmatpush1.bf16.msra.mxu0 %v2351
    %2445 = vmatprep.subr.bf16.mxu0 0
    %2446 = vmatpush1.bf16.msra.mxu0 %v2352
    %2447 = vmatprep.subr.bf16.mxu0 0
    %2448 = vmatpush1.bf16.msra.mxu0 %v2353
    %2449 = vmatprep.subr.bf16.mxu0 0
    %2450 = vmatpush1.bf16.msra.mxu0 %v2354
    %2451 = vmatprep.subr.bf16.mxu0 0
    %2452 = vmatpush1.bf16.msra.mxu0 %v2355
    %2453 = vmatprep.subr.bf16.mxu0 0
    %2454 = vmatpush1.bf16.msra.mxu0 %v2356
    %2455 = vmatprep.subr.bf16.mxu0 0
    %2456 = vmatpush1.bf16.msra.mxu0 %v2357
    %2457 = vmatprep.subr.bf16.mxu0 0
    %2458 = vmatpush1.bf16.msra.mxu0 %v2358
    %2459 = vmatprep.subr.bf16.mxu0 0
    %2460 = vmatpush1.bf16.msra.mxu0 %v2359
    %2461 = vmatprep.subr.bf16.mxu0 0
    %2462 = vmatpush1.bf16.msra.mxu0 %v2360
    %2463 = vmatprep.subr.bf16.mxu0 0
    %2464 = vmatpush1.bf16.msra.mxu0 %v2361
    %2465 = vmatprep.subr.bf16.mxu0 0
    %2466 = vmatpush1.bf16.msra.mxu0 %v2362
    %2467 = vmatprep.mubr.bf16.mxu0 %v2131
    %2468 = vmatmul.mubr.bf16.gmra.mrb[0].mxu0 %v2130
    %v2469 = vpop.f32.mrb[0].mxu0
    %v2470 = vadd.f32 %v2430, %v2469
    %v2471 = vpop.f32.mrb[0].mxu0
    %v2472 = vpop.f32.mrb[0].mxu0
    %v2473 = vpop.f32.mrb[0].mxu0
    %2474 = vdwg.mxu0
    %vm2475 = vcmask 27648
    %2476 = vst.msk [vmem:[#allocation7] sm:$0xf] %vm2475, %v2470
    %v2477 = vmax.f32 %v2470, -20.0
    %v2478 = vmin.f32 %v2477, 2.0
    %v2479 = vmul.f32 %v2478, 1.442695
    %v2480 = vpow.pop %v2479
    %2482 = vrot.lane.b32.xlu0 %v2480, 124
    %v2483 = vpop.permute.xlu0 %2482
    %2485 = vst.msk [vmem:[#allocation8] sm:$0xf] %vm2475, %v2483
    // Predicated region
    $region46: #{tpu_custom_call.1} parent=1 // pred_check
      _
    $region47: #{tpu_custom_call.1} parent=1 // pred_check_branch
      %2487 = sbr.rel (0) target = $region49
    $region48: #{tpu_custom_call.1} parent=1 // pred_region
      %s2489 = ssub.s32 64, 64
      %2490 = vsyncadd [#allocation4], %s2489
      %s2492 = sshll.u32 [#allocation7], 4
      %s2493 = int_to_ptr.vmem [resolvable:$true] %s2492
      %2495 = dma.vmem_to_hbm [thread:$0]  %s2493, 64, %s9, [#allocation4]
    $region49: #{tpu_custom_call.1} parent=1 // pred_fallthru
      _
    // Predicated region
    $region50: #{tpu_custom_call.1} parent=1 // pred_check
      _
    $region51: #{tpu_custom_call.1} parent=1 // pred_check_branch
      %2497 = sbr.rel (0) target = $region53
    $region52: #{tpu_custom_call.1} parent=1 // pred_region
      %s2499 = ssub.s32 64, 64
      %2500 = vsyncadd [#allocation9], %s2499
      %s2502 = sshll.u32 [#allocation8], 4
      %s2503 = int_to_ptr.vmem [resolvable:$true] %s2502
      %2505 = dma.vmem_to_hbm [thread:$0]  %s2503, 64, %s10, [#allocation9]
    $region53: #{tpu_custom_call.1} parent=1 // pred_fallthru
      _
    // Predicated region
    $region54: #{tpu_custom_call.1} parent=1 // pred_check
      _
    $region55: #{tpu_custom_call.1} parent=1 // pred_check_branch
      %2507 = sbr.rel (0) target = $region57
    $region56: #{tpu_custom_call.1} parent=1 // pred_region
      %2508 = dma.done [#allocation4], 64
    $region57: #{tpu_custom_call.1} parent=1 // pred_fallthru
      _
    // Predicated region
    $region58: #{tpu_custom_call.1} parent=1 // pred_check
      _
    $region59: #{tpu_custom_call.1} parent=1 // pred_check_branch
      %2510 = sbr.rel (0) target = $region61
    $region60: #{tpu_custom_call.1} parent=1 // pred_region
      %2511 = dma.done [#allocation9], 64
    $region61: #{tpu_custom_call.1} parent=1 // pred_fallthru
      _
    %2512 = vsyncpa [#allocation3], 1
    %2513 = vsyncpa [#allocation6], 1
    %2514 = vsyncpa [#allocation4], 1
    %2515 = vsyncpa [#allocation9], 1

</llo_original>
